<compile_context>
chip_gen: v7x
topology: tpu7x:2x2x1
jax: 0.10.0
libtpu: 0.0.40
codegen_flags: <defaults>
</compile_context>

<pallas_src>
import functools

import jax
import jax.numpy as jnp
from jax.experimental import pallas as pl
from jax.experimental.pallas import tpu as pltpu

LANES = 128


def _round_up(v, m):
    return (v + m - 1) // m * m


def _device_vmem_bytes():
    """Best-effort VMEM capacity query (falls back to the smallest, v7x)."""
    try:
        return int(pltpu.get_tpu_info().vmem_capacity_bytes)
    except Exception:
        return 64 << 20


# ------------------------------ Pallas kernel ------------------------------ #
def sage_conv_kernel(a_ref, inv_deg_ref, x_ref, wl_ref, wr_ref, b_ref, o_ref,
                     *, tm, apply_relu):
    """One SAGEConv layer for a tm-row stripe of destination nodes.

    a_ref       : (tm, Np)  int8  edge counts (row i = dst node i)
    inv_deg_ref : (tm, 1)   f32   1 / max(in-degree, 1) for this stripe
    x_ref       : (Np, Dp)  bf16  full layer-input features (VMEM resident)
    wl_ref      : (Dp, Dp)  bf16  neighbor projection (Din, Dout layout)
    wr_ref      : (Dp, Dp)  bf16  root projection
    b_ref       : (1, Dp)   f32   bias (lives in lin_l, as in PyG)
    o_ref       : (tm, Dp)        output row stripe
    """
    row0 = pl.multiple_of(pl.program_id(0) * tm, tm)

    # int8 0/1 counts -> bf16 on the VPU; MXU does the neighborhood sum with
    # f32 accumulation; exact f32 1/deg row-scale afterwards gives the mean.
    a_bf16 = a_ref[...].astype(jnp.bfloat16)
    agg = jnp.dot(a_bf16, x_ref[...], preferred_element_type=jnp.float32)
    agg = agg * inv_deg_ref[...]

    x_rows = x_ref[pl.ds(row0, tm), :]
    out = (jnp.dot(agg.astype(jnp.bfloat16), wl_ref[...],
                   preferred_element_type=jnp.float32)
           + jnp.dot(x_rows, wr_ref[...],
                     preferred_element_type=jnp.float32)
           + b_ref[...])
    if apply_relu:
        out = jnp.maximum(out, 0.0)          # ReLU (VPU)
    o_ref[...] = out.astype(o_ref.dtype)


def sage_conv(a_i8, inv_deg, x, wl, wr, b, *, tm, apply_relu, out_dtype,
              vmem_limit, single_buffer_consts=True):
    """One SAGEConv layer as a pallas_call over row tiles of nodes."""
    n_pad, d_pad = x.shape
    grid = (n_pad // tm,)

    def const_spec(shape):
        # Constant-index blocks never change -> single buffer saves VMEM.
        if single_buffer_consts:
            return pl.BlockSpec(shape, lambda i: (0, 0),
                                pipeline_mode=pl.Buffered(1))
        return pl.BlockSpec(shape, lambda i: (0, 0))

    return pl.pallas_call(
        functools.partial(sage_conv_kernel, tm=tm, apply_relu=apply_relu),
        out_shape=jax.ShapeDtypeStruct((n_pad, d_pad), out_dtype),
        grid_spec=pltpu.PrefetchScalarGridSpec(
            num_scalar_prefetch=0,
            grid=grid,
            in_specs=[
                pl.BlockSpec((tm, n_pad), lambda i: (i, 0)),   # A stripe, int8
                pl.BlockSpec((tm, 1), lambda i: (i, 0)),       # 1/deg
                const_spec((n_pad, d_pad)),                    # layer input
                const_spec((d_pad, d_pad)),                    # W_l
                const_spec((d_pad, d_pad)),                    # W_r
                const_spec((1, d_pad)),                        # bias
            ],
            out_specs=pl.BlockSpec((tm, d_pad), lambda i: (i, 0)),
        ),
        compiler_params=pltpu.CompilerParams(
            # Row tiles are fully independent within a layer -> megacore OK.
            dimension_semantics=("parallel",),
            vmem_limit_bytes=vmem_limit),
    )(a_i8, inv_deg, x, wl, wr, b)


# ------------------------------- glue (JAX) -------------------------------- #
def build_binary_adjacency(edge_index, n_pad):
    """Dense int8 adjacency counts (dst-major rows) + f32 inverse in-degree.

    A[i, j] = #edges j->i (PyG 'mean' counts duplicate edges); the 1/deg
    scale is kept separately in f32 so the HBM stream stays 1 byte/entry.
    NOTE: >127 duplicate edges between one ordered pair would overflow int8.
    """
    src, dst = edge_index[0], edge_index[1]
    counts = jnp.zeros((n_pad, n_pad), jnp.float32).at[dst, src].add(1.0)
    deg = counts.sum(axis=1, keepdims=True)
    inv_deg = 1.0 / jnp.maximum(deg, 1.0)
    return counts.astype(jnp.int8), inv_deg.astype(jnp.float32)


def pad_features(x, n_pad, d_pad, dtype=jnp.bfloat16):
    n, d = x.shape
    return jnp.zeros((n_pad, d_pad), jnp.float32).at[:n, :d].set(x).astype(dtype)


def pad_weight(w, d_pad, dtype=jnp.bfloat16):
    """(Din, Dout) weight zero-padded to (d_pad, d_pad)."""
    din, dout = w.shape
    return (jnp.zeros((d_pad, d_pad), jnp.float32)
            .at[:din, :dout].set(w).astype(dtype))


def pad_bias(b, d_pad):
    return jnp.zeros((1, d_pad), jnp.float32).at[:, :b.shape[-1]].set(b)


def _vmem_limit_bytes(n_pad, d_pad, tm, single_buffer_consts, vmem_cap):
    cbuf = 1 if single_buffer_consts else 2
    need = (2 * tm * n_pad                      # A stripe (int8), double-buf
            + 2 * tm * n_pad * 2                # in-kernel bf16 A temporary
            + 2 * tm * LANES * 4                # 1/deg block (lane-padded f32)
            + cbuf * n_pad * d_pad * 2          # resident layer input (bf16)
            + cbuf * 2 * d_pad * d_pad * 2      # W_l + W_r (bf16)
            + cbuf * 8 * d_pad * 4              # bias (sublane-padded f32)
            + 2 * tm * d_pad * 4                # output stripe, double-buf
            + (4 << 20))                        # compiler scratch headroom
    return int(min(max(need, 16 << 20), vmem_cap - (4 << 20)))


def init_params(key, n_nodes, n_embed, n_hidden, dtype=jnp.float32):
    ks = jax.random.split(key, 7)

    def glorot(k, fan_in, fan_out):
        lim = (6.0 / (fan_in + fan_out)) ** 0.5
        return jax.random.uniform(k, (fan_in, fan_out), dtype, -lim, lim)

    return {
        # nn.Embedding default init: N(0, 1)
        "emb": jax.random.normal(ks[0], (n_nodes, n_embed), dtype),
        # conv1: lin_l (with bias) on aggregated, lin_r (no bias) on root;
        # stored as (Din, Dout) so x @ W == PyTorch x @ W^T.
        "wl1": glorot(ks[1], n_embed, n_hidden),
        "wr1": glorot(ks[2], n_embed, n_hidden),
        "b1": jnp.zeros((1, n_hidden), dtype),
        # conv2
        "wl2": glorot(ks[3], n_hidden, n_hidden),
        "wr2": glorot(ks[4], n_hidden, n_hidden),
        "b2": jnp.zeros((1, n_hidden), dtype),
    }


def sage_encoder_forward(params, edge_index, n_nodes, *, dropout_p=0.5,
                         training=False, single_buffer_consts=True):
    n_embed, n_hidden = params["wl1"].shape

    # Lane-dense feature padding; row-tile size derived from device VMEM
    # (tm=256 on 128 MiB v5e/v6e, tm=128 on 64 MiB v7x).
    d_pad = _round_up(max(n_embed, n_hidden), LANES)
    vmem_cap = _device_vmem_bytes()
    tm_target = 256 if vmem_cap >= (100 << 20) else 128
    n_pad = _round_up(max(n_nodes, 8), LANES)
    tm = min(tm_target, n_pad)
    n_pad = _round_up(n_pad, tm)

    # TODO(synk): for realistically sparse graphs replace the dense O(N^2)
    # adjacency stream with a CSR / blocked-sparse gather formulation
    # (PrefetchScalarGridSpec neighbor offsets driving the index_map).
    a_i8, inv_deg = build_binary_adjacency(edge_index, n_pad)
    x = pad_features(params["emb"], n_pad, d_pad)
    wl1 = pad_weight(params["wl1"], d_pad)
    wr1 = pad_weight(params["wr1"], d_pad)
    wl2 = pad_weight(params["wl2"], d_pad)
    wr2 = pad_weight(params["wr2"], d_pad)
    b1 = pad_bias(params["b1"], d_pad)
    b2 = pad_bias(params["b2"], d_pad)

    vmem_limit = _vmem_limit_bytes(n_pad, d_pad, tm, single_buffer_consts,
                                   vmem_cap)

    # TODO(synk): training-mode dropout between the layers is not implemented;
    # eval-mode (identity) semantics are reproduced.
    del dropout_p, training

    # Layer 1 (ReLU) writes h1 to HBM as bf16; layer 2 reads it back.  The
    # h1 round-trip is tiny vs the O(N^2) adjacency stream and lets the row
    # axis stay "parallel" in both calls (both v7x TensorCores usable).
    h1 = sage_conv(a_i8, inv_deg, x, wl1, wr1, b1, tm=tm, apply_relu=True,
                   out_dtype=jnp.bfloat16, vmem_limit=vmem_limit,
                   single_buffer_consts=single_buffer_consts)
    h2 = sage_conv(a_i8, inv_deg, h1, wl2, wr2, b2, tm=tm, apply_relu=False,
                   out_dtype=jnp.float32, vmem_limit=vmem_limit,
                   single_buffer_consts=single_buffer_consts)
    return h2[:n_nodes, :n_hidden]


# --------------------------------- main ------------------------------------ #
if __name__ == "__main__":
    n_nodes, n_embed, n_hidden, n_edges = 64, 32, 32, 256

    key = jax.random.PRNGKey(0)
    k_param, k_edge = jax.random.split(key)

    params = init_params(k_param, n_nodes, n_embed, n_hidden)
    # prop_edge_index: (2, E) int32, row 0 = source nodes, row 1 = target nodes
    edge_index = jax.random.randint(k_edge, (2, n_edges), 0, n_nodes,
                                    dtype=jnp.int32)

    try:
        out = sage_encoder_forward(params, edge_index, n_nodes,
                                   dropout_p=0.5, training=False,
                                   single_buffer_consts=True)
        out = jax.block_until_ready(out)
    except Exception:
        # Portability fallback: jax versions without per-spec pipeline_mode
        # (pl.Buffered) — identical kernel, default double-buffered consts.
        out = sage_encoder_forward(params, edge_index, n_nodes,
                                   dropout_p=0.5, training=False,
                                   single_buffer_consts=False)
        out = jax.block_until_ready(out)

    assert out.shape == (n_nodes, n_hidden)
    assert bool(jnp.all(jnp.isfinite(out)))
    print("KERNEL_OK")
</pallas_src>

<mosaic_0001>
module attributes {stable_mosaic.version = 11 : i64} {
  func.func @sage_conv_kernel(%arg0: i32, %arg1: memref<128x128xi8, #tpu.memory_space<vmem>>, %arg2: memref<128x1xf32, #tpu.memory_space<vmem>>, %arg3: memref<128x128xbf16, #tpu.memory_space<vmem>>, %arg4: memref<128x128xbf16, #tpu.memory_space<vmem>>, %arg5: memref<128x128xbf16, #tpu.memory_space<vmem>>, %arg6: memref<1x128xf32, #tpu.memory_space<vmem>>, %arg7: memref<128x128xbf16, #tpu.memory_space<vmem>>) attributes {dimension_semantics = [#tpu.dimension_semantics<parallel>], iteration_bounds = array<i64: 1>, scalar_prefetch = 0 : i64, scratch_operands = 0 : i64, tpu.core_type = #tpu.core_type<tc>, window_params = [{transform_indices = @transform_0, window_bounds = array<i64: 128, 128>}, {transform_indices = @transform_1, window_bounds = array<i64: 128, 1>}, {pipeline_mode = #tpu.pipeline_mode<synchronous>, transform_indices = @transform_2, window_bounds = array<i64: 128, 128>}, {pipeline_mode = #tpu.pipeline_mode<synchronous>, transform_indices = @transform_3, window_bounds = array<i64: 128, 128>}, {pipeline_mode = #tpu.pipeline_mode<synchronous>, transform_indices = @transform_4, window_bounds = array<i64: 128, 128>}, {pipeline_mode = #tpu.pipeline_mode<synchronous>, transform_indices = @transform_5, window_bounds = array<i64: 1, 128>}, {transform_indices = @transform_6, window_bounds = array<i64: 128, 128>}]} {
    %c128_i32 = arith.constant 128 : i32
    %0 = arith.muli %arg0, %c128_i32 : i32
    %1 = tpu.assume_multiple %0, 128 : i32
    %c0 = arith.constant 0 : index
    %c0_0 = arith.constant 0 : index
    %2 = vector.load %arg1[%c0, %c0_0] : memref<128x128xi8, #tpu.memory_space<vmem>>, vector<128x128xi8>
    %3 = arith.sitofp %2 : vector<128x128xi8> to vector<128x128xbf16>
    %c0_1 = arith.constant 0 : index
    %c0_2 = arith.constant 0 : index
    %4 = vector.load %arg3[%c0_1, %c0_2] : memref<128x128xbf16, #tpu.memory_space<vmem>>, vector<128x128xbf16>
    %cst = arith.constant dense<0.000000e+00> : vector<128x128xf32>
    %5 = tpu.matmul %3, %4, %cst {dimension_numbers = #tpu.dot_dimension_numbers<[1], [0], [0], [1], [0, 0, 1, 1], [], []>} : vector<128x128xbf16>, vector<128x128xbf16>, vector<128x128xf32> -> vector<128x128xf32>
    %c0_3 = arith.constant 0 : index
    %c0_4 = arith.constant 0 : index
    %6 = vector.load %arg2[%c0_3, %c0_4] : memref<128x1xf32, #tpu.memory_space<vmem>>, vector<128x1xf32>
    %7 = vector.broadcast %6 : vector<128x1xf32> to vector<128x128xf32>
    %8 = arith.mulf %5, %7 : vector<128x128xf32>
    %9 = arith.index_cast %1 : i32 to index
    %c0_5 = arith.constant 0 : index
    %10 = vector.load %arg3[%9, %c0_5] : memref<128x128xbf16, #tpu.memory_space<vmem>>, vector<128x128xbf16>
    %11 = arith.truncf %8 : vector<128x128xf32> to vector<128x128xbf16>
    %c0_6 = arith.constant 0 : index
    %c0_7 = arith.constant 0 : index
    %12 = vector.load %arg4[%c0_6, %c0_7] : memref<128x128xbf16, #tpu.memory_space<vmem>>, vector<128x128xbf16>
    %cst_8 = arith.constant dense<0.000000e+00> : vector<128x128xf32>
    %13 = tpu.matmul %11, %12, %cst_8 {dimension_numbers = #tpu.dot_dimension_numbers<[1], [0], [0], [1], [0, 0, 1, 1], [], []>} : vector<128x128xbf16>, vector<128x128xbf16>, vector<128x128xf32> -> vector<128x128xf32>
    %c0_9 = arith.constant 0 : index
    %c0_10 = arith.constant 0 : index
    %14 = vector.load %arg5[%c0_9, %c0_10] : memref<128x128xbf16, #tpu.memory_space<vmem>>, vector<128x128xbf16>
    %cst_11 = arith.constant dense<0.000000e+00> : vector<128x128xf32>
    %15 = tpu.matmul %10, %14, %cst_11 {dimension_numbers = #tpu.dot_dimension_numbers<[1], [0], [0], [1], [0, 0, 1, 1], [], []>} : vector<128x128xbf16>, vector<128x128xbf16>, vector<128x128xf32> -> vector<128x128xf32>
    %16 = arith.addf %13, %15 : vector<128x128xf32>
    %c0_12 = arith.constant 0 : index
    %c0_13 = arith.constant 0 : index
    %17 = vector.load %arg6[%c0_12, %c0_13] : memref<1x128xf32, #tpu.memory_space<vmem>>, vector<1x128xf32>
    %18 = vector.broadcast %17 : vector<1x128xf32> to vector<128x128xf32>
    %19 = arith.addf %16, %18 : vector<128x128xf32>
    %cst_14 = arith.constant 0.000000e+00 : f32
    %20 = vector.broadcast %cst_14 : f32 to vector<128x128xf32>
    %21 = arith.maximumf %19, %20 : vector<128x128xf32>
    %22 = arith.truncf %21 : vector<128x128xf32> to vector<128x128xbf16>
    %c0_15 = arith.constant 0 : index
    %c0_16 = arith.constant 0 : index
    %23 = vector.load %arg7[%c0_15, %c0_16] : memref<128x128xbf16, #tpu.memory_space<vmem>>, vector<128x128xbf16>
    tpu.vector_store %arg7[%c0_15, %c0_16], %22 {strides = array<i32>} : memref<128x128xbf16, #tpu.memory_space<vmem>>, vector<128x128xbf16>,
    return
  }
  func.func @transform_0(%arg0: i32) -> (i32, i32) {
    %c0_i32 = arith.constant 0 : i32
    %c0_i32_0 = arith.constant 0 : i32
    return %arg0, %c0_i32 : i32, i32
  }
  func.func @transform_1(%arg0: i32) -> (i32, i32) {
    %c0_i32 = arith.constant 0 : i32
    %c0_i32_0 = arith.constant 0 : i32
    return %arg0, %c0_i32 : i32, i32
  }
  func.func @transform_2(%arg0: i32) -> (i32, i32) {
    %c0_i32 = arith.constant 0 : i32
    %c0_i32_0 = arith.constant 0 : i32
    %c0_i32_1 = arith.constant 0 : i32
    return %c0_i32, %c0_i32_0 : i32, i32
  }
  func.func @transform_3(%arg0: i32) -> (i32, i32) {
    %c0_i32 = arith.constant 0 : i32
    %c0_i32_0 = arith.constant 0 : i32
    %c0_i32_1 = arith.constant 0 : i32
    return %c0_i32, %c0_i32_0 : i32, i32
  }
  func.func @transform_4(%arg0: i32) -> (i32, i32) {
    %c0_i32 = arith.constant 0 : i32
    %c0_i32_0 = arith.constant 0 : i32
    %c0_i32_1 = arith.constant 0 : i32
    return %c0_i32, %c0_i32_0 : i32, i32
  }
  func.func @transform_5(%arg0: i32) -> (i32, i32) {
    %c0_i32 = arith.constant 0 : i32
    %c0_i32_0 = arith.constant 0 : i32
    %c0_i32_1 = arith.constant 0 : i32
    return %c0_i32, %c0_i32_0 : i32, i32
  }
  func.func @transform_6(%arg0: i32) -> (i32, i32) {
    %c0_i32 = arith.constant 0 : i32
    %c0_i32_0 = arith.constant 0 : i32
    return %arg0, %c0_i32 : i32, i32
  }
}

module attributes {stable_mosaic.version = 11 : i64} {
  func.func @sage_conv_kernel(%arg0: i32, %arg1: memref<128x128xi8, #tpu.memory_space<vmem>>, %arg2: memref<128x1xf32, #tpu.memory_space<vmem>>, %arg3: memref<128x128xbf16, #tpu.memory_space<vmem>>, %arg4: memref<128x128xbf16, #tpu.memory_space<vmem>>, %arg5: memref<128x128xbf16, #tpu.memory_space<vmem>>, %arg6: memref<1x128xf32, #tpu.memory_space<vmem>>, %arg7: memref<128x128xbf16, #tpu.memory_space<vmem>>) attributes {dimension_semantics = [#tpu.dimension_semantics<parallel>], iteration_bounds = array<i64: 1>, scalar_prefetch = 0 : i64, scratch_operands = 0 : i64, tpu.core_type = #tpu.core_type<tc>, window_params = [{transform_indices = @transform_0, window_bounds = array<i64: 128, 128>}, {transform_indices = @transform_1, window_bounds = array<i64: 128, 1>}, {pipeline_mode = #tpu.pipeline_mode<synchronous>, transform_indices = @transform_2, window_bounds = array<i64: 128, 128>}, {pipeline_mode = #tpu.pipeline_mode<synchronous>, transform_indices = @transform_3, window_bounds = array<i64: 128, 128>}, {pipeline_mode = #tpu.pipeline_mode<synchronous>, transform_indices = @transform_4, window_bounds = array<i64: 128, 128>}, {pipeline_mode = #tpu.pipeline_mode<synchronous>, transform_indices = @transform_5, window_bounds = array<i64: 1, 128>}, {transform_indices = @transform_6, window_bounds = array<i64: 128, 128>}]} {
    %c128_i32 = arith.constant 128 : i32
    %0 = arith.muli %arg0, %c128_i32 : i32
    %1 = tpu.assume_multiple %0, 128 : i32
    %c0 = arith.constant 0 : index
    %c0_0 = arith.constant 0 : index
    %2 = vector.load %arg1[%c0, %c0_0] : memref<128x128xi8, #tpu.memory_space<vmem>>, vector<128x128xi8>
    %3 = arith.sitofp %2 : vector<128x128xi8> to vector<128x128xbf16>
    %c0_1 = arith.constant 0 : index
    %c0_2 = arith.constant 0 : index
    %4 = vector.load %arg3[%c0_1, %c0_2] : memref<128x128xbf16, #tpu.memory_space<vmem>>, vector<128x128xbf16>
    %cst = arith.constant dense<0.000000e+00> : vector<128x128xf32>
    %5 = tpu.matmul %3, %4, %cst {dimension_numbers = #tpu.dot_dimension_numbers<[1], [0], [0], [1], [0, 0, 1, 1], [], []>} : vector<128x128xbf16>, vector<128x128xbf16>, vector<128x128xf32> -> vector<128x128xf32>
    %c0_3 = arith.constant 0 : index
    %c0_4 = arith.constant 0 : index
    %6 = vector.load %arg2[%c0_3, %c0_4] : memref<128x1xf32, #tpu.memory_space<vmem>>, vector<128x1xf32>
    %7 = vector.broadcast %6 : vector<128x1xf32> to vector<128x128xf32>
    %8 = arith.mulf %5, %7 : vector<128x128xf32>
    %9 = arith.index_cast %1 : i32 to index
    %c0_5 = arith.constant 0 : index
    %10 = vector.load %arg3[%9, %c0_5] : memref<128x128xbf16, #tpu.memory_space<vmem>>, vector<128x128xbf16>
    %11 = arith.truncf %8 : vector<128x128xf32> to vector<128x128xbf16>
    %c0_6 = arith.constant 0 : index
    %c0_7 = arith.constant 0 : index
    %12 = vector.load %arg4[%c0_6, %c0_7] : memref<128x128xbf16, #tpu.memory_space<vmem>>, vector<128x128xbf16>
    %cst_8 = arith.constant dense<0.000000e+00> : vector<128x128xf32>
    %13 = tpu.matmul %11, %12, %cst_8 {dimension_numbers = #tpu.dot_dimension_numbers<[1], [0], [0], [1], [0, 0, 1, 1], [], []>} : vector<128x128xbf16>, vector<128x128xbf16>, vector<128x128xf32> -> vector<128x128xf32>
    %c0_9 = arith.constant 0 : index
    %c0_10 = arith.constant 0 : index
    %14 = vector.load %arg5[%c0_9, %c0_10] : memref<128x128xbf16, #tpu.memory_space<vmem>>, vector<128x128xbf16>
    %cst_11 = arith.constant dense<0.000000e+00> : vector<128x128xf32>
    %15 = tpu.matmul %10, %14, %cst_11 {dimension_numbers = #tpu.dot_dimension_numbers<[1], [0], [0], [1], [0, 0, 1, 1], [], []>} : vector<128x128xbf16>, vector<128x128xbf16>, vector<128x128xf32> -> vector<128x128xf32>
    %16 = arith.addf %13, %15 : vector<128x128xf32>
    %c0_12 = arith.constant 0 : index
    %c0_13 = arith.constant 0 : index
    %17 = vector.load %arg6[%c0_12, %c0_13] : memref<1x128xf32, #tpu.memory_space<vmem>>, vector<1x128xf32>
    %18 = vector.broadcast %17 : vector<1x128xf32> to vector<128x128xf32>
    %19 = arith.addf %16, %18 : vector<128x128xf32>
    %cst_14 = arith.constant 0.000000e+00 : f32
    %20 = vector.broadcast %cst_14 : f32 to vector<128x128xf32>
    %21 = arith.maximumf %19, %20 : vector<128x128xf32>
    %22 = arith.truncf %21 : vector<128x128xf32> to vector<128x128xbf16>
    %c0_15 = arith.constant 0 : index
    %c0_16 = arith.constant 0 : index
    %23 = vector.load %arg7[%c0_15, %c0_16] : memref<128x128xbf16, #tpu.memory_space<vmem>>, vector<128x128xbf16>
    tpu.vector_store %arg7[%c0_15, %c0_16], %22 {strides = array<i32>} : memref<128x128xbf16, #tpu.memory_space<vmem>>, vector<128x128xbf16>,
    return
  }
  func.func @transform_0(%arg0: i32) -> (i32, i32) {
    %c0_i32 = arith.constant 0 : i32
    %c0_i32_0 = arith.constant 0 : i32
    return %arg0, %c0_i32 : i32, i32
  }
  func.func @transform_1(%arg0: i32) -> (i32, i32) {
    %c0_i32 = arith.constant 0 : i32
    %c0_i32_0 = arith.constant 0 : i32
    return %arg0, %c0_i32 : i32, i32
  }
  func.func @transform_2(%arg0: i32) -> (i32, i32) {
    %c0_i32 = arith.constant 0 : i32
    %c0_i32_0 = arith.constant 0 : i32
    %c0_i32_1 = arith.constant 0 : i32
    return %c0_i32, %c0_i32_0 : i32, i32
  }
  func.func @transform_3(%arg0: i32) -> (i32, i32) {
    %c0_i32 = arith.constant 0 : i32
    %c0_i32_0 = arith.constant 0 : i32
    %c0_i32_1 = arith.constant 0 : i32
    return %c0_i32, %c0_i32_0 : i32, i32
  }
  func.func @transform_4(%arg0: i32) -> (i32, i32) {
    %c0_i32 = arith.constant 0 : i32
    %c0_i32_0 = arith.constant 0 : i32
    %c0_i32_1 = arith.constant 0 : i32
    return %c0_i32, %c0_i32_0 : i32, i32
  }
  func.func @transform_5(%arg0: i32) -> (i32, i32) {
    %c0_i32 = arith.constant 0 : i32
    %c0_i32_0 = arith.constant 0 : i32
    %c0_i32_1 = arith.constant 0 : i32
    return %c0_i32, %c0_i32_0 : i32, i32
  }
  func.func @transform_6(%arg0: i32) -> (i32, i32) {
    %c0_i32 = arith.constant 0 : i32
    %c0_i32_0 = arith.constant 0 : i32
    return %arg0, %c0_i32 : i32, i32
  }
}

</mosaic_0001>

<llo_original>
// kernel: tpu_custom_call.1
$region0: #{tpu_custom_call.1}
  #allocation0 [shape = 'u32[]', space=smem, size = 0x4, offset = 0x4, fixed_abs, tag = 'smem constant byte address 0x4 - core index']
  #allocation1 [shape = 'u32[144,128]{1,0:T(1,128)}', space=vmem, size = 0x12000, scoped, tag = 'internal scratch']
  %s0 = inlined_call_operand.hbm [shape: s8[128,128], index: 0, kind: input, shape index: {}]
  %s1 = inlined_call_operand.vmem [shape: f32[128,1], index: 1, kind: input, shape index: {}]
  %s2 = inlined_call_operand.vmem [shape: bf16[128,128], index: 2, kind: input, shape index: {}]
  %s3 = inlined_call_operand.vmem [shape: bf16[128,128], index: 3, kind: input, shape index: {}]
  %s4 = inlined_call_operand.hbm [shape: bf16[128,128], index: 4, kind: input, shape index: {}]
  %s5 = inlined_call_operand.vmem [shape: f32[1,128], index: 5, kind: input, shape index: {}]
  %s6 = inlined_call_operand.hbm [shape: bf16[128,128], index: 6, kind: output, shape index: {}]
  %s7 = sld [smem:[#allocation0]]
  $region42: #{tpu_custom_call.1} parent=0
    _
  %s9 = ssub.s32 1, %s7
  %s10 = scalar_select 0, %s9, %s7
  $region1: #{tpu_custom_call.1} parent=0
    #allocation2 [shape = 'u8[16384]{0}', space=vmem, size = 0x4000, scoped, tag = 'input window, operand 0, single buffered']
    #allocation3 [shape = 's32[1]{0}', space=sflag, size = 0x4, scoped, tag = 'scoped memory for tpu_custom_call.1']
    #allocation4 [shape = 's32[1]{0}', space=sflag, size = 0x4, scoped, tag = 'scoped memory for tpu_custom_call.1']
    #allocation5 [shape = 'u8[32768]{0}', space=vmem, size = 0x8000, scoped, tag = 'input window, operand 4, single buffered']
    #allocation6 [shape = 's32[1]{0}', space=sflag, size = 0x4, scoped, tag = 'scoped memory for tpu_custom_call.1']
    #allocation7 [shape = 'u8[32768]{0}', space=vmem, size = 0x8000, scoped, tag = 'output window, operand 0, single buffered']
    %11 = vsyncpa [#allocation3], 0
    %12 = vsyncpa [#allocation6], 0
    %13 = vsyncpa [#allocation4], 0
    // Predicated region
    $region2: #{tpu_custom_call.1} parent=1 // pred_check
      _
    $region3: #{tpu_custom_call.1} parent=1 // pred_check_branch
      %15 = sbr.rel (0) target = $region5
    $region4: #{tpu_custom_call.1} parent=1 // pred_region
      %s17 = ssub.s32 512, 512
      %18 = vsyncadd [#allocation3], %s17
      %s19 = sshll.u32 [#allocation2], 4
      %s20 = int_to_ptr.vmem [resolvable:$true] %s19
      %25 = dma.hbm_to_vmem [thread:$0]  %s0, 512, %s20, [#allocation3], 128, 128, 8
    $region5: #{tpu_custom_call.1} parent=1 // pred_fallthru
      _
    // Predicated region
    $region6: #{tpu_custom_call.1} parent=1 // pred_check
      _
    $region7: #{tpu_custom_call.1} parent=1 // pred_check_branch
      %27 = sbr.rel (0) target = $region9
    $region8: #{tpu_custom_call.1} parent=1 // pred_region
      _
    $region9: #{tpu_custom_call.1} parent=1 // pred_fallthru
      _
    // Predicated region
    $region10: #{tpu_custom_call.1} parent=1 // pred_check
      _
    $region11: #{tpu_custom_call.1} parent=1 // pred_check_branch
      %29 = sbr.rel (0) target = $region13
    $region12: #{tpu_custom_call.1} parent=1 // pred_region
      _
    $region13: #{tpu_custom_call.1} parent=1 // pred_fallthru
      _
    // Predicated region
    $region14: #{tpu_custom_call.1} parent=1 // pred_check
      _
    $region15: #{tpu_custom_call.1} parent=1 // pred_check_branch
      %31 = sbr.rel (0) target = $region17
    $region16: #{tpu_custom_call.1} parent=1 // pred_region
      _
    $region17: #{tpu_custom_call.1} parent=1 // pred_fallthru
      _
    // Predicated region
    $region18: #{tpu_custom_call.1} parent=1 // pred_check
      _
    $region19: #{tpu_custom_call.1} parent=1 // pred_check_branch
      %33 = sbr.rel (0) target = $region21
    $region20: #{tpu_custom_call.1} parent=1 // pred_region
      %s35 = ssub.s32 1024, 1024
      %36 = vsyncadd [#allocation6], %s35
      %s37 = sshll.u32 [#allocation5], 4
      %s38 = int_to_ptr.vmem [resolvable:$true] %s37
      %43 = dma.hbm_to_vmem [thread:$0]  %s4, 1024, %s38, [#allocation6], 64, 64, 4
    $region21: #{tpu_custom_call.1} parent=1 // pred_fallthru
      _
    // Predicated region
    $region22: #{tpu_custom_call.1} parent=1 // pred_check
      _
    $region23: #{tpu_custom_call.1} parent=1 // pred_check_branch
      %45 = sbr.rel (0) target = $region25
    $region24: #{tpu_custom_call.1} parent=1 // pred_region
      _
    $region25: #{tpu_custom_call.1} parent=1 // pred_fallthru
      _
    // Predicated region
    $region26: #{tpu_custom_call.1} parent=1 // pred_check
      _
    $region27: #{tpu_custom_call.1} parent=1 // pred_check_branch
      %47 = sbr.rel (0) target = $region29
    $region28: #{tpu_custom_call.1} parent=1 // pred_region
      %48 = dma.done [#allocation3], 512
    $region29: #{tpu_custom_call.1} parent=1 // pred_fallthru
      _
    // Predicated region
    $region30: #{tpu_custom_call.1} parent=1 // pred_check
      _
    $region31: #{tpu_custom_call.1} parent=1 // pred_check_branch
      %50 = sbr.rel (0) target = $region33
    $region32: #{tpu_custom_call.1} parent=1 // pred_region
      %51 = dma.done [#allocation6], 1024
    $region33: #{tpu_custom_call.1} parent=1 // pred_fallthru
      _
    %s53 = smul.u32 0, 128
    %v54 = vld [vmem:[#allocation2] sm:$0xff]
    %v55 = vld [vmem:[#allocation2 + $0x8] sm:$0xff]
    %v56 = vld [vmem:[#allocation2 + $0x10] sm:$0xff]
    %v57 = vld [vmem:[#allocation2 + $0x18] sm:$0xff]
    %v58 = vunpack.c.l.s8.bf16 %v54
    %v59 = vunpack.c.h.s8.bf16 %v54
    %v60 = vunpack.c.l.s8.bf16 %v55
    %v61 = vunpack.c.h.s8.bf16 %v55
    %v62 = vunpack.c.l.s8.bf16 %v56
    %v63 = vunpack.c.h.s8.bf16 %v56
    %v64 = vunpack.c.l.s8.bf16 %v57
    %v65 = vunpack.c.h.s8.bf16 %v57
    %v66 = vld [vmem:[%s2] sm:$0xf]
    %v67 = vld [vmem:[%s2 + $0x4] sm:$0xf]
    %v68 = vld [vmem:[%s2 + $0x8] sm:$0xf]
    %v69 = vld [vmem:[%s2 + $0xc] sm:$0xf]
    %v70 = vld [vmem:[%s2 + $0x10] sm:$0xf]
    %v71 = vld [vmem:[%s2 + $0x14] sm:$0xf]
    %v72 = vld [vmem:[%s2 + $0x18] sm:$0xf]
    %v73 = vld [vmem:[%s2 + $0x1c] sm:$0xf]
    %v74 = vld [vmem:[%s2 + $0x20] sm:$0xf]
    %v75 = vld [vmem:[%s2 + $0x24] sm:$0xf]
    %v76 = vld [vmem:[%s2 + $0x28] sm:$0xf]
    %v77 = vld [vmem:[%s2 + $0x2c] sm:$0xf]
    %v78 = vld [vmem:[%s2 + $0x30] sm:$0xf]
    %v79 = vld [vmem:[%s2 + $0x34] sm:$0xf]
    %v80 = vld [vmem:[%s2 + $0x38] sm:$0xf]
    %v81 = vld [vmem:[%s2 + $0x3c] sm:$0xf]
    %v98 = vunpack.c.l.b16 %v66
    %v99 = vunpack.c.l.b16 %v67
    %v100 = vunpack.c.l.b16 %v68
    %v101 = vunpack.c.l.b16 %v69
    %v102 = vunpack.c.l.b16 %v70
    %v103 = vunpack.c.l.b16 %v71
    %v104 = vunpack.c.l.b16 %v72
    %v105 = vunpack.c.l.b16 %v73
    %v106 = vunpack.c.l.b16 %v74
    %v107 = vunpack.c.l.b16 %v75
    %v108 = vunpack.c.l.b16 %v76
    %v109 = vunpack.c.l.b16 %v77
    %v110 = vunpack.c.l.b16 %v78
    %v111 = vunpack.c.l.b16 %v79
    %v112 = vunpack.c.l.b16 %v80
    %v113 = vunpack.c.l.b16 %v81
    %v114 = vpack.c.b16 %v99, %v98
    %v115 = vpack.c.b16 %v101, %v100
    %v116 = vpack.c.b16 %v103, %v102
    %v117 = vpack.c.b16 %v105, %v104
    %v118 = vpack.c.b16 %v107, %v106
    %v119 = vpack.c.b16 %v109, %v108
    %v120 = vpack.c.b16 %v111, %v110
    %v121 = vpack.c.b16 %v113, %v112
    %130 = vmatprep.subr.bf16.mxu0 0
    %131 = vmatpush1.bf16.msra.mxu0 %v114
    %132 = vmatprep.subr.bf16.mxu0 0
    %133 = vmatpush1.bf16.msra.mxu0 %v115
    %134 = vmatprep.subr.bf16.mxu0 0
    %135 = vmatpush1.bf16.msra.mxu0 %v116
    %136 = vmatprep.subr.bf16.mxu0 0
    %137 = vmatpush1.bf16.msra.mxu0 %v117
    %138 = vmatprep.subr.bf16.mxu0 0
    %139 = vmatpush1.bf16.msra.mxu0 %v118
    %140 = vmatprep.subr.bf16.mxu0 0
    %141 = vmatpush1.bf16.msra.mxu0 %v119
    %142 = vmatprep.subr.bf16.mxu0 0
    %143 = vmatpush1.bf16.msra.mxu0 %v120
    %144 = vmatprep.subr.bf16.mxu0 0
    %145 = vmatpush1.bf16.msra.mxu0 %v121
    %146 = vmatprep.subr.bf16.mxu0 0
    %147 = vmatpush1.bf16.msra.mxu0 0
    %148 = vmatprep.subr.bf16.mxu0 0
    %149 = vmatpush1.bf16.msra.mxu0 0
    %150 = vmatprep.subr.bf16.mxu0 0
    %151 = vmatpush1.bf16.msra.mxu0 0
    %152 = vmatprep.subr.bf16.mxu0 0
    %153 = vmatpush1.bf16.msra.mxu0 0
    %154 = vmatprep.subr.bf16.mxu0 0
    %155 = vmatpush1.bf16.msra.mxu0 0
    %156 = vmatprep.subr.bf16.mxu0 0
    %157 = vmatpush1.bf16.msra.mxu0 0
    %158 = vmatprep.subr.bf16.mxu0 0
    %159 = vmatpush1.bf16.msra.mxu0 0
    %160 = vmatprep.subr.bf16.mxu0 0
    %161 = vmatpush1.bf16.msra.mxu0 0
    %162 = vmatprep.mubr.bf16.mxu0 0
    %163 = vmatmul.mubr.bf16.gmra.mrb[0].mxu0 %v58
    %v164 = vpop.f32.mrb[0].mxu0
    %v165 = vadd.f32 0.0, %v164
    %v166 = vpop.f32.mrb[0].mxu0
    %v167 = vpop.f32.mrb[0].mxu0
    %v168 = vadd.f32 0.0, %v167
    %v169 = vpop.f32.mrb[0].mxu0
    %170 = vmatprep.mubr.bf16.mxu0 0
    %171 = vmatmul.mubr.bf16.gmra.mrb[0].mxu0 %v59
    %v172 = vpop.f32.mrb[0].mxu0
    %v173 = vadd.f32 0.0, %v172
    %v174 = vpop.f32.mrb[0].mxu0
    %v175 = vpop.f32.mrb[0].mxu0
    %v176 = vadd.f32 0.0, %v175
    %v177 = vpop.f32.mrb[0].mxu0
    %178 = vmatprep.mubr.bf16.mxu0 0
    %179 = vmatmul.mubr.bf16.gmra.mrb[0].mxu0 %v60
    %v180 = vpop.f32.mrb[0].mxu0
    %v181 = vadd.f32 0.0, %v180
    %v182 = vpop.f32.mrb[0].mxu0
    %v183 = vpop.f32.mrb[0].mxu0
    %v184 = vadd.f32 0.0, %v183
    %v185 = vpop.f32.mrb[0].mxu0
    %186 = vmatprep.mubr.bf16.mxu0 0
    %187 = vmatmul.mubr.bf16.gmra.mrb[0].mxu0 %v61
    %v188 = vpop.f32.mrb[0].mxu0
    %v189 = vadd.f32 0.0, %v188
    %v190 = vpop.f32.mrb[0].mxu0
    %v191 = vpop.f32.mrb[0].mxu0
    %v192 = vadd.f32 0.0, %v191
    %v193 = vpop.f32.mrb[0].mxu0
    %194 = vmatprep.mubr.bf16.mxu0 0
    %195 = vmatmul.mubr.bf16.gmra.mrb[0].mxu0 %v62
    %v196 = vpop.f32.mrb[0].mxu0
    %v197 = vadd.f32 0.0, %v196
    %v198 = vpop.f32.mrb[0].mxu0
    %v199 = vpop.f32.mrb[0].mxu0
    %v200 = vadd.f32 0.0, %v199
    %v201 = vpop.f32.mrb[0].mxu0
    %202 = vmatprep.mubr.bf16.mxu0 0
    %203 = vmatmul.mubr.bf16.gmra.mrb[0].mxu0 %v63
    %v204 = vpop.f32.mrb[0].mxu0
    %v205 = vadd.f32 0.0, %v204
    %v206 = vpop.f32.mrb[0].mxu0
    %v207 = vpop.f32.mrb[0].mxu0
    %v208 = vadd.f32 0.0, %v207
    %v209 = vpop.f32.mrb[0].mxu0
    %210 = vmatprep.mubr.bf16.mxu0 0
    %211 = vmatmul.mubr.bf16.gmra.mrb[0].mxu0 %v64
    %v212 = vpop.f32.mrb[0].mxu0
    %v213 = vadd.f32 0.0, %v212
    %v214 = vpop.f32.mrb[0].mxu0
    %v215 = vpop.f32.mrb[0].mxu0
    %v216 = vadd.f32 0.0, %v215
    %v217 = vpop.f32.mrb[0].mxu0
    %218 = vmatprep.mubr.bf16.mxu0 0
    %219 = vmatmul.mubr.bf16.gmra.mrb[0].mxu0 %v65
    %v220 = vpop.f32.mrb[0].mxu0
    %v221 = vadd.f32 0.0, %v220
    %v222 = vpop.f32.mrb[0].mxu0
    %v223 = vpop.f32.mrb[0].mxu0
    %v224 = vadd.f32 0.0, %v223
    %v225 = vpop.f32.mrb[0].mxu0
    %226 = vdwg.mxu0
    %v227 = vld [vmem:[%s1] sm:$0xff]
    %v228 = vld [vmem:[%s1 + $0x8] sm:$0xff]
    %v229 = vld [vmem:[%s1 + $0x10] sm:$0xff]
    %v230 = vld [vmem:[%s1 + $0x18] sm:$0xff]
    %v231 = vld [vmem:[%s1 + $0x20] sm:$0xff]
    %v232 = vld [vmem:[%s1 + $0x28] sm:$0xff]
    %v233 = vld [vmem:[%s1 + $0x30] sm:$0xff]
    %v234 = vld [vmem:[%s1 + $0x38] sm:$0xff]
    %v235 = vld [vmem:[%s1 + $0x40] sm:$0xff]
    %v236 = vld [vmem:[%s1 + $0x48] sm:$0xff]
    %v237 = vld [vmem:[%s1 + $0x50] sm:$0xff]
    %v238 = vld [vmem:[%s1 + $0x58] sm:$0xff]
    %v239 = vld [vmem:[%s1 + $0x60] sm:$0xff]
    %v240 = vld [vmem:[%s1 + $0x68] sm:$0xff]
    %v241 = vld [vmem:[%s1 + $0x70] sm:$0xff]
    %v242 = vld [vmem:[%s1 + $0x78] sm:$0xff]
    %244 = vset.pattern.permute.xlu0 0
    %245 = vperm.xlu0 %244, %v227
    %v246 = vpop.permute.xlu0 %245
    %249 = vset.pattern.permute.xlu0 0
    %250 = vperm.xlu0 %249, %v228
    %v251 = vpop.permute.xlu0 %250
    %254 = vset.pattern.permute.xlu0 0
    %255 = vperm.xlu0 %254, %v229
    %v256 = vpop.permute.xlu0 %255
    %259 = vset.pattern.permute.xlu0 0
    %260 = vperm.xlu0 %259, %v230
    %v261 = vpop.permute.xlu0 %260
    %264 = vset.pattern.permute.xlu0 0
    %265 = vperm.xlu0 %264, %v231
    %v266 = vpop.permute.xlu0 %265
    %269 = vset.pattern.permute.xlu0 0
    %270 = vperm.xlu0 %269, %v232
    %v271 = vpop.permute.xlu0 %270
    %274 = vset.pattern.permute.xlu0 0
    %275 = vperm.xlu0 %274, %v233
    %v276 = vpop.permute.xlu0 %275
    %279 = vset.pattern.permute.xlu0 0
    %280 = vperm.xlu0 %279, %v234
    %v281 = vpop.permute.xlu0 %280
    %284 = vset.pattern.permute.xlu0 0
    %285 = vperm.xlu0 %284, %v235
    %v286 = vpop.permute.xlu0 %285
    %289 = vset.pattern.permute.xlu0 0
    %290 = vperm.xlu0 %289, %v236
    %v291 = vpop.permute.xlu0 %290
    %294 = vset.pattern.permute.xlu0 0
    %295 = vperm.xlu0 %294, %v237
    %v296 = vpop.permute.xlu0 %295
    %299 = vset.pattern.permute.xlu0 0
    %300 = vperm.xlu0 %299, %v238
    %v301 = vpop.permute.xlu0 %300
    %304 = vset.pattern.permute.xlu0 0
    %305 = vperm.xlu0 %304, %v239
    %v306 = vpop.permute.xlu0 %305
    %309 = vset.pattern.permute.xlu0 0
    %310 = vperm.xlu0 %309, %v240
    %v311 = vpop.permute.xlu0 %310
    %314 = vset.pattern.permute.xlu0 0
    %315 = vperm.xlu0 %314, %v241
    %v316 = vpop.permute.xlu0 %315
    %319 = vset.pattern.permute.xlu0 0
    %320 = vperm.xlu0 %319, %v242
    %v321 = vpop.permute.xlu0 %320
    %v323 = vmul.f32 %v165, %v246
    %v324 = vmul.f32 %v168, %v251
    %v325 = vmul.f32 %v173, %v256
    %v326 = vmul.f32 %v176, %v261
    %v327 = vmul.f32 %v181, %v266
    %v328 = vmul.f32 %v184, %v271
    %v329 = vmul.f32 %v189, %v276
    %v330 = vmul.f32 %v192, %v281
    %v331 = vmul.f32 %v197, %v286
    %v332 = vmul.f32 %v200, %v291
    %v333 = vmul.f32 %v205, %v296
    %v334 = vmul.f32 %v208, %v301
    %v335 = vmul.f32 %v213, %v306
    %v336 = vmul.f32 %v216, %v311
    %v337 = vmul.f32 %v221, %v316
    %v338 = vmul.f32 %v224, %v321
    %s339 = sshra.s32 %s53, 3
    %s340 = sand.u32 %s53, 7
    %s341 = smul.addr %s339, 4
    %s342 = scalar_lea.vmem %s2, %s341
    %v343 = vld [vmem:[%s342] sm:$0xf]
    %v344 = vld [vmem:[%s342 + $0x4] sm:$0xf]
    %v345 = vld [vmem:[%s342 + $0x8] sm:$0xf]
    %v346 = vld [vmem:[%s342 + $0xc] sm:$0xf]
    %v347 = vld [vmem:[%s342 + $0x10] sm:$0xf]
    %v348 = vld [vmem:[%s342 + $0x14] sm:$0xf]
    %v349 = vld [vmem:[%s342 + $0x18] sm:$0xf]
    %v350 = vld [vmem:[%s342 + $0x1c] sm:$0xf]
    %v351 = vld [vmem:[%s342 + $0x20] sm:$0xf]
    %v352 = vld [vmem:[%s342 + $0x24] sm:$0xf]
    %v353 = vld [vmem:[%s342 + $0x28] sm:$0xf]
    %v354 = vld [vmem:[%s342 + $0x2c] sm:$0xf]
    %v355 = vld [vmem:[%s342 + $0x30] sm:$0xf]
    %v356 = vld [vmem:[%s342 + $0x34] sm:$0xf]
    %v357 = vld [vmem:[%s342 + $0x38] sm:$0xf]
    %v358 = vld [vmem:[%s342 + $0x3c] sm:$0xf]
    %v359 = vpack.c.bf16 %v324, %v323
    %v360 = vpack.c.bf16 %v326, %v325
    %v361 = vpack.c.bf16 %v328, %v327
    %v362 = vpack.c.bf16 %v330, %v329
    %v363 = vpack.c.bf16 %v332, %v331
    %v364 = vpack.c.bf16 %v334, %v333
    %v365 = vpack.c.bf16 %v336, %v335
    %v366 = vpack.c.bf16 %v338, %v337
    %v367 = vld [vmem:[%s3] sm:$0xf]
    %v368 = vld [vmem:[%s3 + $0x4] sm:$0xf]
    %v369 = vld [vmem:[%s3 + $0x8] sm:$0xf]
    %v370 = vld [vmem:[%s3 + $0xc] sm:$0xf]
    %v371 = vld [vmem:[%s3 + $0x10] sm:$0xf]
    %v372 = vld [vmem:[%s3 + $0x14] sm:$0xf]
    %v373 = vld [vmem:[%s3 + $0x18] sm:$0xf]
    %v374 = vld [vmem:[%s3 + $0x1c] sm:$0xf]
    %v375 = vld [vmem:[%s3 + $0x20] sm:$0xf]
    %v376 = vld [vmem:[%s3 + $0x24] sm:$0xf]
    %v377 = vld [vmem:[%s3 + $0x28] sm:$0xf]
    %v378 = vld [vmem:[%s3 + $0x2c] sm:$0xf]
    %v379 = vld [vmem:[%s3 + $0x30] sm:$0xf]
    %v380 = vld [vmem:[%s3 + $0x34] sm:$0xf]
    %v381 = vld [vmem:[%s3 + $0x38] sm:$0xf]
    %v382 = vld [vmem:[%s3 + $0x3c] sm:$0xf]
    %v383 = vld [vmem:[#allocation5] sm:$0xf]
    %v384 = vld [vmem:[#allocation5 + $0x4] sm:$0xf]
    %v385 = vld [vmem:[#allocation5 + $0x8] sm:$0xf]
    %v386 = vld [vmem:[#allocation5 + $0xc] sm:$0xf]
    %v387 = vld [vmem:[#allocation5 + $0x10] sm:$0xf]
    %v388 = vld [vmem:[#allocation5 + $0x14] sm:$0xf]
    %v389 = vld [vmem:[#allocation5 + $0x18] sm:$0xf]
    %v390 = vld [vmem:[#allocation5 + $0x1c] sm:$0xf]
    %v391 = vld [vmem:[#allocation5 + $0x20] sm:$0xf]
    %v392 = vld [vmem:[#allocation5 + $0x24] sm:$0xf]
    %v393 = vld [vmem:[#allocation5 + $0x28] sm:$0xf]
    %v394 = vld [vmem:[#allocation5 + $0x2c] sm:$0xf]
    %v395 = vld [vmem:[#allocation5 + $0x30] sm:$0xf]
    %v396 = vld [vmem:[#allocation5 + $0x34] sm:$0xf]
    %v397 = vld [vmem:[#allocation5 + $0x38] sm:$0xf]
    %v398 = vld [vmem:[#allocation5 + $0x3c] sm:$0xf]
    %v415 = vunpack.c.l.b16 %v343
    %v416 = vunpack.c.l.b16 %v344
    %v417 = vunpack.c.l.b16 %v345
    %v418 = vunpack.c.l.b16 %v346
    %v419 = vunpack.c.l.b16 %v347
    %v420 = vunpack.c.l.b16 %v348
    %v421 = vunpack.c.l.b16 %v349
    %v422 = vunpack.c.l.b16 %v350
    %v423 = vunpack.c.l.b16 %v351
    %v424 = vunpack.c.l.b16 %v352
    %v425 = vunpack.c.l.b16 %v353
    %v426 = vunpack.c.l.b16 %v354
    %v427 = vunpack.c.l.b16 %v355
    %v428 = vunpack.c.l.b16 %v356
    %v429 = vunpack.c.l.b16 %v357
    %v430 = vunpack.c.l.b16 %v358
    %v431 = vpack.c.b16 %v416, %v415
    %v432 = vpack.c.b16 %v418, %v417
    %v433 = vpack.c.b16 %v420, %v419
    %v434 = vpack.c.b16 %v422, %v421
    %v435 = vpack.c.b16 %v424, %v423
    %v436 = vpack.c.b16 %v426, %v425
    %v437 = vpack.c.b16 %v428, %v427
    %v438 = vpack.c.b16 %v430, %v429
    %v463 = vunpack.c.l.b16 %v383
    %v464 = vunpack.c.l.b16 %v384
    %v465 = vunpack.c.l.b16 %v385
    %v466 = vunpack.c.l.b16 %v386
    %v467 = vunpack.c.l.b16 %v387
    %v468 = vunpack.c.l.b16 %v388
    %v469 = vunpack.c.l.b16 %v389
    %v470 = vunpack.c.l.b16 %v390
    %v471 = vunpack.c.l.b16 %v391
    %v472 = vunpack.c.l.b16 %v392
    %v473 = vunpack.c.l.b16 %v393
    %v474 = vunpack.c.l.b16 %v394
    %v475 = vunpack.c.l.b16 %v395
    %v476 = vunpack.c.l.b16 %v396
    %v477 = vunpack.c.l.b16 %v397
    %v478 = vunpack.c.l.b16 %v398
    %v479 = vpack.c.b16 %v464, %v463
    %v480 = vpack.c.b16 %v466, %v465
    %v481 = vpack.c.b16 %v468, %v467
    %v482 = vpack.c.b16 %v470, %v469
    %v483 = vpack.c.b16 %v472, %v471
    %v484 = vpack.c.b16 %v474, %v473
    %v485 = vpack.c.b16 %v476, %v475
    %v486 = vpack.c.b16 %v478, %v477
    %495 = vmatprep.subr.bf16.mxu0 0
    %496 = vmatpush1.bf16.msra.mxu0 %v479
    %497 = vmatprep.subr.bf16.mxu0 0
    %498 = vmatpush1.bf16.msra.mxu0 %v480
    %499 = vmatprep.subr.bf16.mxu0 0
    %500 = vmatpush1.bf16.msra.mxu0 %v481
    %501 = vmatprep.subr.bf16.mxu0 0
    %502 = vmatpush1.bf16.msra.mxu0 %v482
    %503 = vmatprep.subr.bf16.mxu0 0
    %504 = vmatpush1.bf16.msra.mxu0 %v483
    %505 = vmatprep.subr.bf16.mxu0 0
    %506 = vmatpush1.bf16.msra.mxu0 %v484
    %507 = vmatprep.subr.bf16.mxu0 0
    %508 = vmatpush1.bf16.msra.mxu0 %v485
    %509 = vmatprep.subr.bf16.mxu0 0
    %510 = vmatpush1.bf16.msra.mxu0 %v486
    %511 = vmatprep.subr.bf16.mxu0 0
    %512 = vmatpush1.bf16.msra.mxu0 0
    %513 = vmatprep.subr.bf16.mxu0 0
    %514 = vmatpush1.bf16.msra.mxu0 0
    %515 = vmatprep.subr.bf16.mxu0 0
    %516 = vmatpush1.bf16.msra.mxu0 0
    %517 = vmatprep.subr.bf16.mxu0 0
    %518 = vmatpush1.bf16.msra.mxu0 0
    %519 = vmatprep.subr.bf16.mxu0 0
    %520 = vmatpush1.bf16.msra.mxu0 0
    %521 = vmatprep.subr.bf16.mxu0 0
    %522 = vmatpush1.bf16.msra.mxu0 0
    %523 = vmatprep.subr.bf16.mxu0 0
    %524 = vmatpush1.bf16.msra.mxu0 0
    %525 = vmatprep.subr.bf16.mxu0 0
    %526 = vmatpush1.bf16.msra.mxu0 0
    %527 = vmatprep.mubr.bf16.mxu0 0
    %528 = vmatmul.mubr.bf16.gmra.mrb[0].mxu0 %v431
    %v529 = vpop.f32.mrb[0].mxu0
    %v530 = vadd.f32 0.0, %v529
    %v531 = vpop.f32.mrb[0].mxu0
    %v532 = vpop.f32.mrb[0].mxu0
    %v533 = vadd.f32 0.0, %v532
    %v534 = vpop.f32.mrb[0].mxu0
    %535 = vmatprep.mubr.bf16.mxu0 0
    %536 = vmatmul.mubr.bf16.gmra.mrb[0].mxu0 %v432
    %v537 = vpop.f32.mrb[0].mxu0
    %v538 = vadd.f32 0.0, %v537
    %v539 = vpop.f32.mrb[0].mxu0
    %v540 = vpop.f32.mrb[0].mxu0
    %v541 = vadd.f32 0.0, %v540
    %v542 = vpop.f32.mrb[0].mxu0
    %543 = vmatprep.mubr.bf16.mxu0 0
    %544 = vmatmul.mubr.bf16.gmra.mrb[0].mxu0 %v433
    %v545 = vpop.f32.mrb[0].mxu0
    %v546 = vadd.f32 0.0, %v545
    %v547 = vpop.f32.mrb[0].mxu0
    %v548 = vpop.f32.mrb[0].mxu0
    %v549 = vadd.f32 0.0, %v548
    %v550 = vpop.f32.mrb[0].mxu0
    %551 = vmatprep.mubr.bf16.mxu0 0
    %552 = vmatmul.mubr.bf16.gmra.mrb[0].mxu0 %v434
    %v553 = vpop.f32.mrb[0].mxu0
    %v554 = vadd.f32 0.0, %v553
    %v555 = vpop.f32.mrb[0].mxu0
    %v556 = vpop.f32.mrb[0].mxu0
    %v557 = vadd.f32 0.0, %v556
    %v558 = vpop.f32.mrb[0].mxu0
    %559 = vmatprep.mubr.bf16.mxu0 0
    %560 = vmatmul.mubr.bf16.gmra.mrb[0].mxu0 %v435
    %v561 = vpop.f32.mrb[0].mxu0
    %v562 = vadd.f32 0.0, %v561
    %v563 = vpop.f32.mrb[0].mxu0
    %v564 = vpop.f32.mrb[0].mxu0
    %v565 = vadd.f32 0.0, %v564
    %v566 = vpop.f32.mrb[0].mxu0
    %567 = vmatprep.mubr.bf16.mxu0 0
    %568 = vmatmul.mubr.bf16.gmra.mrb[0].mxu0 %v436
    %v569 = vpop.f32.mrb[0].mxu0
    %v570 = vadd.f32 0.0, %v569
    %v571 = vpop.f32.mrb[0].mxu0
    %v572 = vpop.f32.mrb[0].mxu0
    %v573 = vadd.f32 0.0, %v572
    %v574 = vpop.f32.mrb[0].mxu0
    %575 = vmatprep.mubr.bf16.mxu0 0
    %576 = vmatmul.mubr.bf16.gmra.mrb[0].mxu0 %v437
    %v577 = vpop.f32.mrb[0].mxu0
    %v578 = vadd.f32 0.0, %v577
    %v579 = vpop.f32.mrb[0].mxu0
    %v580 = vpop.f32.mrb[0].mxu0
    %v581 = vadd.f32 0.0, %v580
    %v582 = vpop.f32.mrb[0].mxu0
    %583 = vmatprep.mubr.bf16.mxu0 0
    %584 = vmatmul.mubr.bf16.gmra.mrb[0].mxu0 %v438
    %v585 = vpop.f32.mrb[0].mxu0
    %v586 = vadd.f32 0.0, %v585
    %v587 = vpop.f32.mrb[0].mxu0
    %v588 = vpop.f32.mrb[0].mxu0
    %v589 = vadd.f32 0.0, %v588
    %v590 = vpop.f32.mrb[0].mxu0
    %591 = vdwg.mxu0
    %v608 = vunpack.c.l.b16 %v367
    %v609 = vunpack.c.l.b16 %v368
    %v610 = vunpack.c.l.b16 %v369
    %v611 = vunpack.c.l.b16 %v370
    %v612 = vunpack.c.l.b16 %v371
    %v613 = vunpack.c.l.b16 %v372
    %v614 = vunpack.c.l.b16 %v373
    %v615 = vunpack.c.l.b16 %v374
    %v616 = vunpack.c.l.b16 %v375
    %v617 = vunpack.c.l.b16 %v376
    %v618 = vunpack.c.l.b16 %v377
    %v619 = vunpack.c.l.b16 %v378
    %v620 = vunpack.c.l.b16 %v379
    %v621 = vunpack.c.l.b16 %v380
    %v622 = vunpack.c.l.b16 %v381
    %v623 = vunpack.c.l.b16 %v382
    %v624 = vpack.c.b16 %v609, %v608
    %v625 = vpack.c.b16 %v611, %v610
    %v626 = vpack.c.b16 %v613, %v612
    %v627 = vpack.c.b16 %v615, %v614
    %v628 = vpack.c.b16 %v617, %v616
    %v629 = vpack.c.b16 %v619, %v618
    %v630 = vpack.c.b16 %v621, %v620
    %v631 = vpack.c.b16 %v623, %v622
    %640 = vmatprep.subr.bf16.mxu0 0
    %641 = vmatpush1.bf16.msra.mxu0 %v624
    %642 = vmatprep.subr.bf16.mxu0 0
    %643 = vmatpush1.bf16.msra.mxu0 %v625
    %644 = vmatprep.subr.bf16.mxu0 0
    %645 = vmatpush1.bf16.msra.mxu0 %v626
    %646 = vmatprep.subr.bf16.mxu0 0
    %647 = vmatpush1.bf16.msra.mxu0 %v627
    %648 = vmatprep.subr.bf16.mxu0 0
    %649 = vmatpush1.bf16.msra.mxu0 %v628
    %650 = vmatprep.subr.bf16.mxu0 0
    %651 = vmatpush1.bf16.msra.mxu0 %v629
    %652 = vmatprep.subr.bf16.mxu0 0
    %653 = vmatpush1.bf16.msra.mxu0 %v630
    %654 = vmatprep.subr.bf16.mxu0 0
    %655 = vmatpush1.bf16.msra.mxu0 %v631
    %656 = vmatprep.subr.bf16.mxu0 0
    %657 = vmatpush1.bf16.msra.mxu0 0
    %658 = vmatprep.subr.bf16.mxu0 0
    %659 = vmatpush1.bf16.msra.mxu0 0
    %660 = vmatprep.subr.bf16.mxu0 0
    %661 = vmatpush1.bf16.msra.mxu0 0
    %662 = vmatprep.subr.bf16.mxu0 0
    %663 = vmatpush1.bf16.msra.mxu0 0
    %664 = vmatprep.subr.bf16.mxu0 0
    %665 = vmatpush1.bf16.msra.mxu0 0
    %666 = vmatprep.subr.bf16.mxu0 0
    %667 = vmatpush1.bf16.msra.mxu0 0
    %668 = vmatprep.subr.bf16.mxu0 0
    %669 = vmatpush1.bf16.msra.mxu0 0
    %670 = vmatprep.subr.bf16.mxu0 0
    %671 = vmatpush1.bf16.msra.mxu0 0
    %672 = vmatprep.mubr.bf16.mxu0 0
    %673 = vmatmul.mubr.bf16.gmra.mrb[0].mxu0 %v359
    %v674 = vpop.f32.mrb[0].mxu0
    %v675 = vadd.f32 %v530, %v674
    %v676 = vpop.f32.mrb[0].mxu0
    %v677 = vpop.f32.mrb[0].mxu0
    %v678 = vadd.f32 %v533, %v677
    %v679 = vpop.f32.mrb[0].mxu0
    %680 = vmatprep.mubr.bf16.mxu0 0
    %681 = vmatmul.mubr.bf16.gmra.mrb[0].mxu0 %v360
    %v682 = vpop.f32.mrb[0].mxu0
    %v683 = vadd.f32 %v538, %v682
    %v684 = vpop.f32.mrb[0].mxu0
    %v685 = vpop.f32.mrb[0].mxu0
    %v686 = vadd.f32 %v541, %v685
    %v687 = vpop.f32.mrb[0].mxu0
    %688 = vmatprep.mubr.bf16.mxu0 0
    %689 = vmatmul.mubr.bf16.gmra.mrb[0].mxu0 %v361
    %v690 = vpop.f32.mrb[0].mxu0
    %v691 = vadd.f32 %v546, %v690
    %v692 = vpop.f32.mrb[0].mxu0
    %v693 = vpop.f32.mrb[0].mxu0
    %v694 = vadd.f32 %v549, %v693
    %v695 = vpop.f32.mrb[0].mxu0
    %696 = vmatprep.mubr.bf16.mxu0 0
    %697 = vmatmul.mubr.bf16.gmra.mrb[0].mxu0 %v362
    %v698 = vpop.f32.mrb[0].mxu0
    %v699 = vadd.f32 %v554, %v698
    %v700 = vpop.f32.mrb[0].mxu0
    %v701 = vpop.f32.mrb[0].mxu0
    %v702 = vadd.f32 %v557, %v701
    %v703 = vpop.f32.mrb[0].mxu0
    %704 = vmatprep.mubr.bf16.mxu0 0
    %705 = vmatmul.mubr.bf16.gmra.mrb[0].mxu0 %v363
    %v706 = vpop.f32.mrb[0].mxu0
    %v707 = vadd.f32 %v562, %v706
    %v708 = vpop.f32.mrb[0].mxu0
    %v709 = vpop.f32.mrb[0].mxu0
    %v710 = vadd.f32 %v565, %v709
    %v711 = vpop.f32.mrb[0].mxu0
    %712 = vmatprep.mubr.bf16.mxu0 0
    %713 = vmatmul.mubr.bf16.gmra.mrb[0].mxu0 %v364
    %v714 = vpop.f32.mrb[0].mxu0
    %v715 = vadd.f32 %v570, %v714
    %v716 = vpop.f32.mrb[0].mxu0
    %v717 = vpop.f32.mrb[0].mxu0
    %v718 = vadd.f32 %v573, %v717
    %v719 = vpop.f32.mrb[0].mxu0
    %720 = vmatprep.mubr.bf16.mxu0 0
    %721 = vmatmul.mubr.bf16.gmra.mrb[0].mxu0 %v365
    %v722 = vpop.f32.mrb[0].mxu0
    %v723 = vadd.f32 %v578, %v722
    %v724 = vpop.f32.mrb[0].mxu0
    %v725 = vpop.f32.mrb[0].mxu0
    %v726 = vadd.f32 %v581, %v725
    %v727 = vpop.f32.mrb[0].mxu0
    %728 = vmatprep.mubr.bf16.mxu0 0
    %729 = vmatmul.mubr.bf16.gmra.mrb[0].mxu0 %v366
    %v730 = vpop.f32.mrb[0].mxu0
    %v731 = vadd.f32 %v586, %v730
    %v732 = vpop.f32.mrb[0].mxu0
    %v733 = vpop.f32.mrb[0].mxu0
    %v734 = vadd.f32 %v589, %v733
    %v735 = vpop.f32.mrb[0].mxu0
    %736 = vdwg.mxu0
    %v737 = vld [vmem:[%s5] sm:$0x1]
    %v739 = vlaneseq
    %v740 = vshrl.u32 %v739, 7
    %v741 = vsub.s32 0, %v740
    %v742 = vrot.slane %v737, %v741
    %v744 = vadd.f32 %v675, %v742
    %v745 = vadd.f32 %v678, %v742
    %v746 = vadd.f32 %v683, %v742
    %v747 = vadd.f32 %v686, %v742
    %v748 = vadd.f32 %v691, %v742
    %v749 = vadd.f32 %v694, %v742
    %v750 = vadd.f32 %v699, %v742
    %v751 = vadd.f32 %v702, %v742
    %v752 = vadd.f32 %v707, %v742
    %v753 = vadd.f32 %v710, %v742
    %v754 = vadd.f32 %v715, %v742
    %v755 = vadd.f32 %v718, %v742
    %v756 = vadd.f32 %v723, %v742
    %v757 = vadd.f32 %v726, %v742
    %v758 = vadd.f32 %v731, %v742
    %v759 = vadd.f32 %v734, %v742
    %v760 = vmax.f32 %v744, 0.0
    %v761 = vmax.f32 %v745, 0.0
    %v762 = vmax.f32 %v746, 0.0
    %v763 = vmax.f32 %v747, 0.0
    %v764 = vmax.f32 %v748, 0.0
    %v765 = vmax.f32 %v749, 0.0
    %v766 = vmax.f32 %v750, 0.0
    %v767 = vmax.f32 %v751, 0.0
    %v768 = vmax.f32 %v752, 0.0
    %v769 = vmax.f32 %v753, 0.0
    %v770 = vmax.f32 %v754, 0.0
    %v771 = vmax.f32 %v755, 0.0
    %v772 = vmax.f32 %v756, 0.0
    %v773 = vmax.f32 %v757, 0.0
    %v774 = vmax.f32 %v758, 0.0
    %v775 = vmax.f32 %v759, 0.0
    %v776 = vpack.c.bf16 %v761, %v760
    %v777 = vpack.c.bf16 %v763, %v762
    %v778 = vpack.c.bf16 %v765, %v764
    %v779 = vpack.c.bf16 %v767, %v766
    %v780 = vpack.c.bf16 %v769, %v768
    %v781 = vpack.c.bf16 %v771, %v770
    %v782 = vpack.c.bf16 %v773, %v772
    %v783 = vpack.c.bf16 %v775, %v774
    %v792 = vunpack.c.l.b16 %v776
    %v793 = vunpack.c.h.b16 %v776
    %v794 = vunpack.c.l.b16 %v777
    %v795 = vunpack.c.h.b16 %v777
    %v796 = vunpack.c.l.b16 %v778
    %v797 = vunpack.c.h.b16 %v778
    %v798 = vunpack.c.l.b16 %v779
    %v799 = vunpack.c.h.b16 %v779
    %v800 = vunpack.c.l.b16 %v780
    %v801 = vunpack.c.h.b16 %v780
    %v802 = vunpack.c.l.b16 %v781
    %v803 = vunpack.c.h.b16 %v781
    %v804 = vunpack.c.l.b16 %v782
    %v805 = vunpack.c.h.b16 %v782
    %v806 = vunpack.c.l.b16 %v783
    %v807 = vunpack.c.h.b16 %v783
    %v808 = vpack.c.b16 %v792, %v792
    %v809 = vpack.c.b16 %v793, %v793
    %v810 = vpack.c.b16 %v794, %v794
    %v811 = vpack.c.b16 %v795, %v795
    %v812 = vpack.c.b16 %v796, %v796
    %v813 = vpack.c.b16 %v797, %v797
    %v814 = vpack.c.b16 %v798, %v798
    %v815 = vpack.c.b16 %v799, %v799
    %v816 = vpack.c.b16 %v800, %v800
    %v817 = vpack.c.b16 %v801, %v801
    %v818 = vpack.c.b16 %v802, %v802
    %v819 = vpack.c.b16 %v803, %v803
    %v820 = vpack.c.b16 %v804, %v804
    %v821 = vpack.c.b16 %v805, %v805
    %v822 = vpack.c.b16 %v806, %v806
    %v823 = vpack.c.b16 %v807, %v807
    %840 = vst [vmem:[#allocation7] sm:$0xf] %v808
    %841 = vst [vmem:[#allocation7 + $0x4] sm:$0xf] %v809
    %842 = vst [vmem:[#allocation7 + $0x8] sm:$0xf] %v810
    %843 = vst [vmem:[#allocation7 + $0xc] sm:$0xf] %v811
    %844 = vst [vmem:[#allocation7 + $0x10] sm:$0xf] %v812
    %845 = vst [vmem:[#allocation7 + $0x14] sm:$0xf] %v813
    %846 = vst [vmem:[#allocation7 + $0x18] sm:$0xf] %v814
    %847 = vst [vmem:[#allocation7 + $0x1c] sm:$0xf] %v815
    %848 = vst [vmem:[#allocation7 + $0x20] sm:$0xf] %v816
    %849 = vst [vmem:[#allocation7 + $0x24] sm:$0xf] %v817
    %850 = vst [vmem:[#allocation7 + $0x28] sm:$0xf] %v818
    %851 = vst [vmem:[#allocation7 + $0x2c] sm:$0xf] %v819
    %852 = vst [vmem:[#allocation7 + $0x30] sm:$0xf] %v820
    %853 = vst [vmem:[#allocation7 + $0x34] sm:$0xf] %v821
    %854 = vst [vmem:[#allocation7 + $0x38] sm:$0xf] %v822
    %855 = vst [vmem:[#allocation7 + $0x3c] sm:$0xf] %v823
    // Predicated region
    $region34: #{tpu_custom_call.1} parent=1 // pred_check
      _
    $region35: #{tpu_custom_call.1} parent=1 // pred_check_branch
      %857 = sbr.rel (0) target = $region37
    $region36: #{tpu_custom_call.1} parent=1 // pred_region
      %s859 = ssub.s32 1024, 1024
      %860 = vsyncadd [#allocation4], %s859
      %s861 = sshll.u32 [#allocation7], 4
      %s862 = int_to_ptr.vmem [resolvable:$true] %s861
      %867 = dma.vmem_to_hbm [thread:$0]  %s862, 1024, %s6, [#allocation4], 64, 64, 4
    $region37: #{tpu_custom_call.1} parent=1 // pred_fallthru
      _
    // Predicated region
    $region38: #{tpu_custom_call.1} parent=1 // pred_check
      _
    $region39: #{tpu_custom_call.1} parent=1 // pred_check_branch
      %869 = sbr.rel (0) target = $region41
    $region40: #{tpu_custom_call.1} parent=1 // pred_region
      %870 = dma.done [#allocation4], 1024
    $region41: #{tpu_custom_call.1} parent=1 // pred_fallthru
      _
    %871 = vsyncpa [#allocation3], 1
    %872 = vsyncpa [#allocation6], 1
    %873 = vsyncpa [#allocation4], 1

// kernel: tpu_custom_call.1
$region0: #{tpu_custom_call.1}
  #allocation0 [shape = 'u32[]', space=smem, size = 0x4, offset = 0x4, fixed_abs, tag = 'smem constant byte address 0x4 - core index']
  #allocation1 [shape = 'u32[144,128]{1,0:T(1,128)}', space=vmem, size = 0x12000, scoped, tag = 'internal scratch']
  %s0 = inlined_call_operand.hbm [shape: s8[128,128], index: 0, kind: input, shape index: {}]
  %s1 = inlined_call_operand.vmem [shape: f32[128,1], index: 1, kind: input, shape index: {}]
  %s2 = inlined_call_operand.vmem [shape: bf16[128,128], index: 2, kind: input, shape index: {}]
  %s3 = inlined_call_operand.vmem [shape: bf16[128,128], index: 3, kind: input, shape index: {}]
  %s4 = inlined_call_operand.hbm [shape: bf16[128,128], index: 4, kind: input, shape index: {}]
  %s5 = inlined_call_operand.vmem [shape: f32[1,128], index: 5, kind: input, shape index: {}]
  %s6 = inlined_call_operand.hbm [shape: bf16[128,128], index: 6, kind: output, shape index: {}]
  %s7 = sld [smem:[#allocation0]]
  $region42: #{tpu_custom_call.1} parent=0
    _
  %s9 = ssub.s32 1, %s7
  %s10 = scalar_select 0, %s9, %s7
  $region1: #{tpu_custom_call.1} parent=0
    #allocation2 [shape = 'u8[16384]{0}', space=vmem, size = 0x4000, scoped, tag = 'input window, operand 0, single buffered']
    #allocation3 [shape = 's32[1]{0}', space=sflag, size = 0x4, scoped, tag = 'scoped memory for tpu_custom_call.1']
    #allocation4 [shape = 's32[1]{0}', space=sflag, size = 0x4, scoped, tag = 'scoped memory for tpu_custom_call.1']
    #allocation5 [shape = 'u8[32768]{0}', space=vmem, size = 0x8000, scoped, tag = 'input window, operand 4, single buffered']
    #allocation6 [shape = 's32[1]{0}', space=sflag, size = 0x4, scoped, tag = 'scoped memory for tpu_custom_call.1']
    #allocation7 [shape = 'u8[32768]{0}', space=vmem, size = 0x8000, scoped, tag = 'output window, operand 0, single buffered']
    %11 = vsyncpa [#allocation3], 0
    %12 = vsyncpa [#allocation6], 0
    %13 = vsyncpa [#allocation4], 0
    // Predicated region
    $region2: #{tpu_custom_call.1} parent=1 // pred_check
      _
    $region3: #{tpu_custom_call.1} parent=1 // pred_check_branch
      %15 = sbr.rel (0) target = $region5
    $region4: #{tpu_custom_call.1} parent=1 // pred_region
      %s17 = ssub.s32 512, 512
      %18 = vsyncadd [#allocation3], %s17
      %s19 = sshll.u32 [#allocation2], 4
      %s20 = int_to_ptr.vmem [resolvable:$true] %s19
      %25 = dma.hbm_to_vmem [thread:$0]  %s0, 512, %s20, [#allocation3], 128, 128, 8
    $region5: #{tpu_custom_call.1} parent=1 // pred_fallthru
      _
    // Predicated region
    $region6: #{tpu_custom_call.1} parent=1 // pred_check
      _
    $region7: #{tpu_custom_call.1} parent=1 // pred_check_branch
      %27 = sbr.rel (0) target = $region9
    $region8: #{tpu_custom_call.1} parent=1 // pred_region
      _
    $region9: #{tpu_custom_call.1} parent=1 // pred_fallthru
      _
    // Predicated region
    $region10: #{tpu_custom_call.1} parent=1 // pred_check
      _
    $region11: #{tpu_custom_call.1} parent=1 // pred_check_branch
      %29 = sbr.rel (0) target = $region13
    $region12: #{tpu_custom_call.1} parent=1 // pred_region
      _
    $region13: #{tpu_custom_call.1} parent=1 // pred_fallthru
      _
    // Predicated region
    $region14: #{tpu_custom_call.1} parent=1 // pred_check
      _
    $region15: #{tpu_custom_call.1} parent=1 // pred_check_branch
      %31 = sbr.rel (0) target = $region17
    $region16: #{tpu_custom_call.1} parent=1 // pred_region
      _
    $region17: #{tpu_custom_call.1} parent=1 // pred_fallthru
      _
    // Predicated region
    $region18: #{tpu_custom_call.1} parent=1 // pred_check
      _
    $region19: #{tpu_custom_call.1} parent=1 // pred_check_branch
      %33 = sbr.rel (0) target = $region21
    $region20: #{tpu_custom_call.1} parent=1 // pred_region
      %s35 = ssub.s32 1024, 1024
      %36 = vsyncadd [#allocation6], %s35
      %s37 = sshll.u32 [#allocation5], 4
      %s38 = int_to_ptr.vmem [resolvable:$true] %s37
      %43 = dma.hbm_to_vmem [thread:$0]  %s4, 1024, %s38, [#allocation6], 64, 64, 4
    $region21: #{tpu_custom_call.1} parent=1 // pred_fallthru
      _
    // Predicated region
    $region22: #{tpu_custom_call.1} parent=1 // pred_check
      _
    $region23: #{tpu_custom_call.1} parent=1 // pred_check_branch
      %45 = sbr.rel (0) target = $region25
    $region24: #{tpu_custom_call.1} parent=1 // pred_region
      _
    $region25: #{tpu_custom_call.1} parent=1 // pred_fallthru
      _
    // Predicated region
    $region26: #{tpu_custom_call.1} parent=1 // pred_check
      _
    $region27: #{tpu_custom_call.1} parent=1 // pred_check_branch
      %47 = sbr.rel (0) target = $region29
    $region28: #{tpu_custom_call.1} parent=1 // pred_region
      %48 = dma.done [#allocation3], 512
    $region29: #{tpu_custom_call.1} parent=1 // pred_fallthru
      _
    // Predicated region
    $region30: #{tpu_custom_call.1} parent=1 // pred_check
      _
    $region31: #{tpu_custom_call.1} parent=1 // pred_check_branch
      %50 = sbr.rel (0) target = $region33
    $region32: #{tpu_custom_call.1} parent=1 // pred_region
      %51 = dma.done [#allocation6], 1024
    $region33: #{tpu_custom_call.1} parent=1 // pred_fallthru
      _
    %s53 = smul.u32 0, 128
    %v54 = vld [vmem:[#allocation2] sm:$0xff]
    %v55 = vld [vmem:[#allocation2 + $0x8] sm:$0xff]
    %v56 = vld [vmem:[#allocation2 + $0x10] sm:$0xff]
    %v57 = vld [vmem:[#allocation2 + $0x18] sm:$0xff]
    %v58 = vunpack.c.l.s8.bf16 %v54
    %v59 = vunpack.c.h.s8.bf16 %v54
    %v60 = vunpack.c.l.s8.bf16 %v55
    %v61 = vunpack.c.h.s8.bf16 %v55
    %v62 = vunpack.c.l.s8.bf16 %v56
    %v63 = vunpack.c.h.s8.bf16 %v56
    %v64 = vunpack.c.l.s8.bf16 %v57
    %v65 = vunpack.c.h.s8.bf16 %v57
    %v66 = vld [vmem:[%s2] sm:$0xf]
    %v67 = vld [vmem:[%s2 + $0x4] sm:$0xf]
    %v68 = vld [vmem:[%s2 + $0x8] sm:$0xf]
    %v69 = vld [vmem:[%s2 + $0xc] sm:$0xf]
    %v70 = vld [vmem:[%s2 + $0x10] sm:$0xf]
    %v71 = vld [vmem:[%s2 + $0x14] sm:$0xf]
    %v72 = vld [vmem:[%s2 + $0x18] sm:$0xf]
    %v73 = vld [vmem:[%s2 + $0x1c] sm:$0xf]
    %v74 = vld [vmem:[%s2 + $0x20] sm:$0xf]
    %v75 = vld [vmem:[%s2 + $0x24] sm:$0xf]
    %v76 = vld [vmem:[%s2 + $0x28] sm:$0xf]
    %v77 = vld [vmem:[%s2 + $0x2c] sm:$0xf]
    %v78 = vld [vmem:[%s2 + $0x30] sm:$0xf]
    %v79 = vld [vmem:[%s2 + $0x34] sm:$0xf]
    %v80 = vld [vmem:[%s2 + $0x38] sm:$0xf]
    %v81 = vld [vmem:[%s2 + $0x3c] sm:$0xf]
    %v98 = vunpack.c.l.b16 %v66
    %v99 = vunpack.c.l.b16 %v67
    %v100 = vunpack.c.l.b16 %v68
    %v101 = vunpack.c.l.b16 %v69
    %v102 = vunpack.c.l.b16 %v70
    %v103 = vunpack.c.l.b16 %v71
    %v104 = vunpack.c.l.b16 %v72
    %v105 = vunpack.c.l.b16 %v73
    %v106 = vunpack.c.l.b16 %v74
    %v107 = vunpack.c.l.b16 %v75
    %v108 = vunpack.c.l.b16 %v76
    %v109 = vunpack.c.l.b16 %v77
    %v110 = vunpack.c.l.b16 %v78
    %v111 = vunpack.c.l.b16 %v79
    %v112 = vunpack.c.l.b16 %v80
    %v113 = vunpack.c.l.b16 %v81
    %v114 = vpack.c.b16 %v99, %v98
    %v115 = vpack.c.b16 %v101, %v100
    %v116 = vpack.c.b16 %v103, %v102
    %v117 = vpack.c.b16 %v105, %v104
    %v118 = vpack.c.b16 %v107, %v106
    %v119 = vpack.c.b16 %v109, %v108
    %v120 = vpack.c.b16 %v111, %v110
    %v121 = vpack.c.b16 %v113, %v112
    %130 = vmatprep.subr.bf16.mxu0 0
    %131 = vmatpush1.bf16.msra.mxu0 %v114
    %132 = vmatprep.subr.bf16.mxu0 0
    %133 = vmatpush1.bf16.msra.mxu0 %v115
    %134 = vmatprep.subr.bf16.mxu0 0
    %135 = vmatpush1.bf16.msra.mxu0 %v116
    %136 = vmatprep.subr.bf16.mxu0 0
    %137 = vmatpush1.bf16.msra.mxu0 %v117
    %138 = vmatprep.subr.bf16.mxu0 0
    %139 = vmatpush1.bf16.msra.mxu0 %v118
    %140 = vmatprep.subr.bf16.mxu0 0
    %141 = vmatpush1.bf16.msra.mxu0 %v119
    %142 = vmatprep.subr.bf16.mxu0 0
    %143 = vmatpush1.bf16.msra.mxu0 %v120
    %144 = vmatprep.subr.bf16.mxu0 0
    %145 = vmatpush1.bf16.msra.mxu0 %v121
    %146 = vmatprep.subr.bf16.mxu0 0
    %147 = vmatpush1.bf16.msra.mxu0 0
    %148 = vmatprep.subr.bf16.mxu0 0
    %149 = vmatpush1.bf16.msra.mxu0 0
    %150 = vmatprep.subr.bf16.mxu0 0
    %151 = vmatpush1.bf16.msra.mxu0 0
    %152 = vmatprep.subr.bf16.mxu0 0
    %153 = vmatpush1.bf16.msra.mxu0 0
    %154 = vmatprep.subr.bf16.mxu0 0
    %155 = vmatpush1.bf16.msra.mxu0 0
    %156 = vmatprep.subr.bf16.mxu0 0
    %157 = vmatpush1.bf16.msra.mxu0 0
    %158 = vmatprep.subr.bf16.mxu0 0
    %159 = vmatpush1.bf16.msra.mxu0 0
    %160 = vmatprep.subr.bf16.mxu0 0
    %161 = vmatpush1.bf16.msra.mxu0 0
    %162 = vmatprep.mubr.bf16.mxu0 0
    %163 = vmatmul.mubr.bf16.gmra.mrb[0].mxu0 %v58
    %v164 = vpop.f32.mrb[0].mxu0
    %v165 = vadd.f32 0.0, %v164
    %v166 = vpop.f32.mrb[0].mxu0
    %v167 = vpop.f32.mrb[0].mxu0
    %v168 = vadd.f32 0.0, %v167
    %v169 = vpop.f32.mrb[0].mxu0
    %170 = vmatprep.mubr.bf16.mxu0 0
    %171 = vmatmul.mubr.bf16.gmra.mrb[0].mxu0 %v59
    %v172 = vpop.f32.mrb[0].mxu0
    %v173 = vadd.f32 0.0, %v172
    %v174 = vpop.f32.mrb[0].mxu0
    %v175 = vpop.f32.mrb[0].mxu0
    %v176 = vadd.f32 0.0, %v175
    %v177 = vpop.f32.mrb[0].mxu0
    %178 = vmatprep.mubr.bf16.mxu0 0
    %179 = vmatmul.mubr.bf16.gmra.mrb[0].mxu0 %v60
    %v180 = vpop.f32.mrb[0].mxu0
    %v181 = vadd.f32 0.0, %v180
    %v182 = vpop.f32.mrb[0].mxu0
    %v183 = vpop.f32.mrb[0].mxu0
    %v184 = vadd.f32 0.0, %v183
    %v185 = vpop.f32.mrb[0].mxu0
    %186 = vmatprep.mubr.bf16.mxu0 0
    %187 = vmatmul.mubr.bf16.gmra.mrb[0].mxu0 %v61
    %v188 = vpop.f32.mrb[0].mxu0
    %v189 = vadd.f32 0.0, %v188
    %v190 = vpop.f32.mrb[0].mxu0
    %v191 = vpop.f32.mrb[0].mxu0
    %v192 = vadd.f32 0.0, %v191
    %v193 = vpop.f32.mrb[0].mxu0
    %194 = vmatprep.mubr.bf16.mxu0 0
    %195 = vmatmul.mubr.bf16.gmra.mrb[0].mxu0 %v62
    %v196 = vpop.f32.mrb[0].mxu0
    %v197 = vadd.f32 0.0, %v196
    %v198 = vpop.f32.mrb[0].mxu0
    %v199 = vpop.f32.mrb[0].mxu0
    %v200 = vadd.f32 0.0, %v199
    %v201 = vpop.f32.mrb[0].mxu0
    %202 = vmatprep.mubr.bf16.mxu0 0
    %203 = vmatmul.mubr.bf16.gmra.mrb[0].mxu0 %v63
    %v204 = vpop.f32.mrb[0].mxu0
    %v205 = vadd.f32 0.0, %v204
    %v206 = vpop.f32.mrb[0].mxu0
    %v207 = vpop.f32.mrb[0].mxu0
    %v208 = vadd.f32 0.0, %v207
    %v209 = vpop.f32.mrb[0].mxu0
    %210 = vmatprep.mubr.bf16.mxu0 0
    %211 = vmatmul.mubr.bf16.gmra.mrb[0].mxu0 %v64
    %v212 = vpop.f32.mrb[0].mxu0
    %v213 = vadd.f32 0.0, %v212
    %v214 = vpop.f32.mrb[0].mxu0
    %v215 = vpop.f32.mrb[0].mxu0
    %v216 = vadd.f32 0.0, %v215
    %v217 = vpop.f32.mrb[0].mxu0
    %218 = vmatprep.mubr.bf16.mxu0 0
    %219 = vmatmul.mubr.bf16.gmra.mrb[0].mxu0 %v65
    %v220 = vpop.f32.mrb[0].mxu0
    %v221 = vadd.f32 0.0, %v220
    %v222 = vpop.f32.mrb[0].mxu0
    %v223 = vpop.f32.mrb[0].mxu0
    %v224 = vadd.f32 0.0, %v223
    %v225 = vpop.f32.mrb[0].mxu0
    %226 = vdwg.mxu0
    %v227 = vld [vmem:[%s1] sm:$0xff]
    %v228 = vld [vmem:[%s1 + $0x8] sm:$0xff]
    %v229 = vld [vmem:[%s1 + $0x10] sm:$0xff]
    %v230 = vld [vmem:[%s1 + $0x18] sm:$0xff]
    %v231 = vld [vmem:[%s1 + $0x20] sm:$0xff]
    %v232 = vld [vmem:[%s1 + $0x28] sm:$0xff]
    %v233 = vld [vmem:[%s1 + $0x30] sm:$0xff]
    %v234 = vld [vmem:[%s1 + $0x38] sm:$0xff]
    %v235 = vld [vmem:[%s1 + $0x40] sm:$0xff]
    %v236 = vld [vmem:[%s1 + $0x48] sm:$0xff]
    %v237 = vld [vmem:[%s1 + $0x50] sm:$0xff]
    %v238 = vld [vmem:[%s1 + $0x58] sm:$0xff]
    %v239 = vld [vmem:[%s1 + $0x60] sm:$0xff]
    %v240 = vld [vmem:[%s1 + $0x68] sm:$0xff]
    %v241 = vld [vmem:[%s1 + $0x70] sm:$0xff]
    %v242 = vld [vmem:[%s1 + $0x78] sm:$0xff]
    %244 = vset.pattern.permute.xlu0 0
    %245 = vperm.xlu0 %244, %v227
    %v246 = vpop.permute.xlu0 %245
    %249 = vset.pattern.permute.xlu0 0
    %250 = vperm.xlu0 %249, %v228
    %v251 = vpop.permute.xlu0 %250
    %254 = vset.pattern.permute.xlu0 0
    %255 = vperm.xlu0 %254, %v229
    %v256 = vpop.permute.xlu0 %255
    %259 = vset.pattern.permute.xlu0 0
    %260 = vperm.xlu0 %259, %v230
    %v261 = vpop.permute.xlu0 %260
    %264 = vset.pattern.permute.xlu0 0
    %265 = vperm.xlu0 %264, %v231
    %v266 = vpop.permute.xlu0 %265
    %269 = vset.pattern.permute.xlu0 0
    %270 = vperm.xlu0 %269, %v232
    %v271 = vpop.permute.xlu0 %270
    %274 = vset.pattern.permute.xlu0 0
    %275 = vperm.xlu0 %274, %v233
    %v276 = vpop.permute.xlu0 %275
    %279 = vset.pattern.permute.xlu0 0
    %280 = vperm.xlu0 %279, %v234
    %v281 = vpop.permute.xlu0 %280
    %284 = vset.pattern.permute.xlu0 0
    %285 = vperm.xlu0 %284, %v235
    %v286 = vpop.permute.xlu0 %285
    %289 = vset.pattern.permute.xlu0 0
    %290 = vperm.xlu0 %289, %v236
    %v291 = vpop.permute.xlu0 %290
    %294 = vset.pattern.permute.xlu0 0
    %295 = vperm.xlu0 %294, %v237
    %v296 = vpop.permute.xlu0 %295
    %299 = vset.pattern.permute.xlu0 0
    %300 = vperm.xlu0 %299, %v238
    %v301 = vpop.permute.xlu0 %300
    %304 = vset.pattern.permute.xlu0 0
    %305 = vperm.xlu0 %304, %v239
    %v306 = vpop.permute.xlu0 %305
    %309 = vset.pattern.permute.xlu0 0
    %310 = vperm.xlu0 %309, %v240
    %v311 = vpop.permute.xlu0 %310
    %314 = vset.pattern.permute.xlu0 0
    %315 = vperm.xlu0 %314, %v241
    %v316 = vpop.permute.xlu0 %315
    %319 = vset.pattern.permute.xlu0 0
    %320 = vperm.xlu0 %319, %v242
    %v321 = vpop.permute.xlu0 %320
    %v323 = vmul.f32 %v165, %v246
    %v324 = vmul.f32 %v168, %v251
    %v325 = vmul.f32 %v173, %v256
    %v326 = vmul.f32 %v176, %v261
    %v327 = vmul.f32 %v181, %v266
    %v328 = vmul.f32 %v184, %v271
    %v329 = vmul.f32 %v189, %v276
    %v330 = vmul.f32 %v192, %v281
    %v331 = vmul.f32 %v197, %v286
    %v332 = vmul.f32 %v200, %v291
    %v333 = vmul.f32 %v205, %v296
    %v334 = vmul.f32 %v208, %v301
    %v335 = vmul.f32 %v213, %v306
    %v336 = vmul.f32 %v216, %v311
    %v337 = vmul.f32 %v221, %v316
    %v338 = vmul.f32 %v224, %v321
    %s339 = sshra.s32 %s53, 3
    %s340 = sand.u32 %s53, 7
    %s341 = smul.addr %s339, 4
    %s342 = scalar_lea.vmem %s2, %s341
    %v343 = vld [vmem:[%s342] sm:$0xf]
    %v344 = vld [vmem:[%s342 + $0x4] sm:$0xf]
    %v345 = vld [vmem:[%s342 + $0x8] sm:$0xf]
    %v346 = vld [vmem:[%s342 + $0xc] sm:$0xf]
    %v347 = vld [vmem:[%s342 + $0x10] sm:$0xf]
    %v348 = vld [vmem:[%s342 + $0x14] sm:$0xf]
    %v349 = vld [vmem:[%s342 + $0x18] sm:$0xf]
    %v350 = vld [vmem:[%s342 + $0x1c] sm:$0xf]
    %v351 = vld [vmem:[%s342 + $0x20] sm:$0xf]
    %v352 = vld [vmem:[%s342 + $0x24] sm:$0xf]
    %v353 = vld [vmem:[%s342 + $0x28] sm:$0xf]
    %v354 = vld [vmem:[%s342 + $0x2c] sm:$0xf]
    %v355 = vld [vmem:[%s342 + $0x30] sm:$0xf]
    %v356 = vld [vmem:[%s342 + $0x34] sm:$0xf]
    %v357 = vld [vmem:[%s342 + $0x38] sm:$0xf]
    %v358 = vld [vmem:[%s342 + $0x3c] sm:$0xf]
    %v359 = vpack.c.bf16 %v324, %v323
    %v360 = vpack.c.bf16 %v326, %v325
    %v361 = vpack.c.bf16 %v328, %v327
    %v362 = vpack.c.bf16 %v330, %v329
    %v363 = vpack.c.bf16 %v332, %v331
    %v364 = vpack.c.bf16 %v334, %v333
    %v365 = vpack.c.bf16 %v336, %v335
    %v366 = vpack.c.bf16 %v338, %v337
    %v367 = vld [vmem:[%s3] sm:$0xf]
    %v368 = vld [vmem:[%s3 + $0x4] sm:$0xf]
    %v369 = vld [vmem:[%s3 + $0x8] sm:$0xf]
    %v370 = vld [vmem:[%s3 + $0xc] sm:$0xf]
    %v371 = vld [vmem:[%s3 + $0x10] sm:$0xf]
    %v372 = vld [vmem:[%s3 + $0x14] sm:$0xf]
    %v373 = vld [vmem:[%s3 + $0x18] sm:$0xf]
    %v374 = vld [vmem:[%s3 + $0x1c] sm:$0xf]
    %v375 = vld [vmem:[%s3 + $0x20] sm:$0xf]
    %v376 = vld [vmem:[%s3 + $0x24] sm:$0xf]
    %v377 = vld [vmem:[%s3 + $0x28] sm:$0xf]
    %v378 = vld [vmem:[%s3 + $0x2c] sm:$0xf]
    %v379 = vld [vmem:[%s3 + $0x30] sm:$0xf]
    %v380 = vld [vmem:[%s3 + $0x34] sm:$0xf]
    %v381 = vld [vmem:[%s3 + $0x38] sm:$0xf]
    %v382 = vld [vmem:[%s3 + $0x3c] sm:$0xf]
    %v383 = vld [vmem:[#allocation5] sm:$0xf]
    %v384 = vld [vmem:[#allocation5 + $0x4] sm:$0xf]
    %v385 = vld [vmem:[#allocation5 + $0x8] sm:$0xf]
    %v386 = vld [vmem:[#allocation5 + $0xc] sm:$0xf]
    %v387 = vld [vmem:[#allocation5 + $0x10] sm:$0xf]
    %v388 = vld [vmem:[#allocation5 + $0x14] sm:$0xf]
    %v389 = vld [vmem:[#allocation5 + $0x18] sm:$0xf]
    %v390 = vld [vmem:[#allocation5 + $0x1c] sm:$0xf]
    %v391 = vld [vmem:[#allocation5 + $0x20] sm:$0xf]
    %v392 = vld [vmem:[#allocation5 + $0x24] sm:$0xf]
    %v393 = vld [vmem:[#allocation5 + $0x28] sm:$0xf]
    %v394 = vld [vmem:[#allocation5 + $0x2c] sm:$0xf]
    %v395 = vld [vmem:[#allocation5 + $0x30] sm:$0xf]
    %v396 = vld [vmem:[#allocation5 + $0x34] sm:$0xf]
    %v397 = vld [vmem:[#allocation5 + $0x38] sm:$0xf]
    %v398 = vld [vmem:[#allocation5 + $0x3c] sm:$0xf]
    %v415 = vunpack.c.l.b16 %v343
    %v416 = vunpack.c.l.b16 %v344
    %v417 = vunpack.c.l.b16 %v345
    %v418 = vunpack.c.l.b16 %v346
    %v419 = vunpack.c.l.b16 %v347
    %v420 = vunpack.c.l.b16 %v348
    %v421 = vunpack.c.l.b16 %v349
    %v422 = vunpack.c.l.b16 %v350
    %v423 = vunpack.c.l.b16 %v351
    %v424 = vunpack.c.l.b16 %v352
    %v425 = vunpack.c.l.b16 %v353
    %v426 = vunpack.c.l.b16 %v354
    %v427 = vunpack.c.l.b16 %v355
    %v428 = vunpack.c.l.b16 %v356
    %v429 = vunpack.c.l.b16 %v357
    %v430 = vunpack.c.l.b16 %v358
    %v431 = vpack.c.b16 %v416, %v415
    %v432 = vpack.c.b16 %v418, %v417
    %v433 = vpack.c.b16 %v420, %v419
    %v434 = vpack.c.b16 %v422, %v421
    %v435 = vpack.c.b16 %v424, %v423
    %v436 = vpack.c.b16 %v426, %v425
    %v437 = vpack.c.b16 %v428, %v427
    %v438 = vpack.c.b16 %v430, %v429
    %v463 = vunpack.c.l.b16 %v383
    %v464 = vunpack.c.l.b16 %v384
    %v465 = vunpack.c.l.b16 %v385
    %v466 = vunpack.c.l.b16 %v386
    %v467 = vunpack.c.l.b16 %v387
    %v468 = vunpack.c.l.b16 %v388
    %v469 = vunpack.c.l.b16 %v389
    %v470 = vunpack.c.l.b16 %v390
    %v471 = vunpack.c.l.b16 %v391
    %v472 = vunpack.c.l.b16 %v392
    %v473 = vunpack.c.l.b16 %v393
    %v474 = vunpack.c.l.b16 %v394
    %v475 = vunpack.c.l.b16 %v395
    %v476 = vunpack.c.l.b16 %v396
    %v477 = vunpack.c.l.b16 %v397
    %v478 = vunpack.c.l.b16 %v398
    %v479 = vpack.c.b16 %v464, %v463
    %v480 = vpack.c.b16 %v466, %v465
    %v481 = vpack.c.b16 %v468, %v467
    %v482 = vpack.c.b16 %v470, %v469
    %v483 = vpack.c.b16 %v472, %v471
    %v484 = vpack.c.b16 %v474, %v473
    %v485 = vpack.c.b16 %v476, %v475
    %v486 = vpack.c.b16 %v478, %v477
    %495 = vmatprep.subr.bf16.mxu0 0
    %496 = vmatpush1.bf16.msra.mxu0 %v479
    %497 = vmatprep.subr.bf16.mxu0 0
    %498 = vmatpush1.bf16.msra.mxu0 %v480
    %499 = vmatprep.subr.bf16.mxu0 0
    %500 = vmatpush1.bf16.msra.mxu0 %v481
    %501 = vmatprep.subr.bf16.mxu0 0
    %502 = vmatpush1.bf16.msra.mxu0 %v482
    %503 = vmatprep.subr.bf16.mxu0 0
    %504 = vmatpush1.bf16.msra.mxu0 %v483
    %505 = vmatprep.subr.bf16.mxu0 0
    %506 = vmatpush1.bf16.msra.mxu0 %v484
    %507 = vmatprep.subr.bf16.mxu0 0
    %508 = vmatpush1.bf16.msra.mxu0 %v485
    %509 = vmatprep.subr.bf16.mxu0 0
    %510 = vmatpush1.bf16.msra.mxu0 %v486
    %511 = vmatprep.subr.bf16.mxu0 0
    %512 = vmatpush1.bf16.msra.mxu0 0
    %513 = vmatprep.subr.bf16.mxu0 0
    %514 = vmatpush1.bf16.msra.mxu0 0
    %515 = vmatprep.subr.bf16.mxu0 0
    %516 = vmatpush1.bf16.msra.mxu0 0
    %517 = vmatprep.subr.bf16.mxu0 0
    %518 = vmatpush1.bf16.msra.mxu0 0
    %519 = vmatprep.subr.bf16.mxu0 0
    %520 = vmatpush1.bf16.msra.mxu0 0
    %521 = vmatprep.subr.bf16.mxu0 0
    %522 = vmatpush1.bf16.msra.mxu0 0
    %523 = vmatprep.subr.bf16.mxu0 0
    %524 = vmatpush1.bf16.msra.mxu0 0
    %525 = vmatprep.subr.bf16.mxu0 0
    %526 = vmatpush1.bf16.msra.mxu0 0
    %527 = vmatprep.mubr.bf16.mxu0 0
    %528 = vmatmul.mubr.bf16.gmra.mrb[0].mxu0 %v431
    %v529 = vpop.f32.mrb[0].mxu0
    %v530 = vadd.f32 0.0, %v529
    %v531 = vpop.f32.mrb[0].mxu0
    %v532 = vpop.f32.mrb[0].mxu0
    %v533 = vadd.f32 0.0, %v532
    %v534 = vpop.f32.mrb[0].mxu0
    %535 = vmatprep.mubr.bf16.mxu0 0
    %536 = vmatmul.mubr.bf16.gmra.mrb[0].mxu0 %v432
    %v537 = vpop.f32.mrb[0].mxu0
    %v538 = vadd.f32 0.0, %v537
    %v539 = vpop.f32.mrb[0].mxu0
    %v540 = vpop.f32.mrb[0].mxu0
    %v541 = vadd.f32 0.0, %v540
    %v542 = vpop.f32.mrb[0].mxu0
    %543 = vmatprep.mubr.bf16.mxu0 0
    %544 = vmatmul.mubr.bf16.gmra.mrb[0].mxu0 %v433
    %v545 = vpop.f32.mrb[0].mxu0
    %v546 = vadd.f32 0.0, %v545
    %v547 = vpop.f32.mrb[0].mxu0
    %v548 = vpop.f32.mrb[0].mxu0
    %v549 = vadd.f32 0.0, %v548
    %v550 = vpop.f32.mrb[0].mxu0
    %551 = vmatprep.mubr.bf16.mxu0 0
    %552 = vmatmul.mubr.bf16.gmra.mrb[0].mxu0 %v434
    %v553 = vpop.f32.mrb[0].mxu0
    %v554 = vadd.f32 0.0, %v553
    %v555 = vpop.f32.mrb[0].mxu0
    %v556 = vpop.f32.mrb[0].mxu0
    %v557 = vadd.f32 0.0, %v556
    %v558 = vpop.f32.mrb[0].mxu0
    %559 = vmatprep.mubr.bf16.mxu0 0
    %560 = vmatmul.mubr.bf16.gmra.mrb[0].mxu0 %v435
    %v561 = vpop.f32.mrb[0].mxu0
    %v562 = vadd.f32 0.0, %v561
    %v563 = vpop.f32.mrb[0].mxu0
    %v564 = vpop.f32.mrb[0].mxu0
    %v565 = vadd.f32 0.0, %v564
    %v566 = vpop.f32.mrb[0].mxu0
    %567 = vmatprep.mubr.bf16.mxu0 0
    %568 = vmatmul.mubr.bf16.gmra.mrb[0].mxu0 %v436
    %v569 = vpop.f32.mrb[0].mxu0
    %v570 = vadd.f32 0.0, %v569
    %v571 = vpop.f32.mrb[0].mxu0
    %v572 = vpop.f32.mrb[0].mxu0
    %v573 = vadd.f32 0.0, %v572
    %v574 = vpop.f32.mrb[0].mxu0
    %575 = vmatprep.mubr.bf16.mxu0 0
    %576 = vmatmul.mubr.bf16.gmra.mrb[0].mxu0 %v437
    %v577 = vpop.f32.mrb[0].mxu0
    %v578 = vadd.f32 0.0, %v577
    %v579 = vpop.f32.mrb[0].mxu0
    %v580 = vpop.f32.mrb[0].mxu0
    %v581 = vadd.f32 0.0, %v580
    %v582 = vpop.f32.mrb[0].mxu0
    %583 = vmatprep.mubr.bf16.mxu0 0
    %584 = vmatmul.mubr.bf16.gmra.mrb[0].mxu0 %v438
    %v585 = vpop.f32.mrb[0].mxu0
    %v586 = vadd.f32 0.0, %v585
    %v587 = vpop.f32.mrb[0].mxu0
    %v588 = vpop.f32.mrb[0].mxu0
    %v589 = vadd.f32 0.0, %v588
    %v590 = vpop.f32.mrb[0].mxu0
    %591 = vdwg.mxu0
    %v608 = vunpack.c.l.b16 %v367
    %v609 = vunpack.c.l.b16 %v368
    %v610 = vunpack.c.l.b16 %v369
    %v611 = vunpack.c.l.b16 %v370
    %v612 = vunpack.c.l.b16 %v371
    %v613 = vunpack.c.l.b16 %v372
    %v614 = vunpack.c.l.b16 %v373
    %v615 = vunpack.c.l.b16 %v374
    %v616 = vunpack.c.l.b16 %v375
    %v617 = vunpack.c.l.b16 %v376
    %v618 = vunpack.c.l.b16 %v377
    %v619 = vunpack.c.l.b16 %v378
    %v620 = vunpack.c.l.b16 %v379
    %v621 = vunpack.c.l.b16 %v380
    %v622 = vunpack.c.l.b16 %v381
    %v623 = vunpack.c.l.b16 %v382
    %v624 = vpack.c.b16 %v609, %v608
    %v625 = vpack.c.b16 %v611, %v610
    %v626 = vpack.c.b16 %v613, %v612
    %v627 = vpack.c.b16 %v615, %v614
    %v628 = vpack.c.b16 %v617, %v616
    %v629 = vpack.c.b16 %v619, %v618
    %v630 = vpack.c.b16 %v621, %v620
    %v631 = vpack.c.b16 %v623, %v622
    %640 = vmatprep.subr.bf16.mxu0 0
    %641 = vmatpush1.bf16.msra.mxu0 %v624
    %642 = vmatprep.subr.bf16.mxu0 0
    %643 = vmatpush1.bf16.msra.mxu0 %v625
    %644 = vmatprep.subr.bf16.mxu0 0
    %645 = vmatpush1.bf16.msra.mxu0 %v626
    %646 = vmatprep.subr.bf16.mxu0 0
    %647 = vmatpush1.bf16.msra.mxu0 %v627
    %648 = vmatprep.subr.bf16.mxu0 0
    %649 = vmatpush1.bf16.msra.mxu0 %v628
    %650 = vmatprep.subr.bf16.mxu0 0
    %651 = vmatpush1.bf16.msra.mxu0 %v629
    %652 = vmatprep.subr.bf16.mxu0 0
    %653 = vmatpush1.bf16.msra.mxu0 %v630
    %654 = vmatprep.subr.bf16.mxu0 0
    %655 = vmatpush1.bf16.msra.mxu0 %v631
    %656 = vmatprep.subr.bf16.mxu0 0
    %657 = vmatpush1.bf16.msra.mxu0 0
    %658 = vmatprep.subr.bf16.mxu0 0
    %659 = vmatpush1.bf16.msra.mxu0 0
    %660 = vmatprep.subr.bf16.mxu0 0
    %661 = vmatpush1.bf16.msra.mxu0 0
    %662 = vmatprep.subr.bf16.mxu0 0
    %663 = vmatpush1.bf16.msra.mxu0 0
    %664 = vmatprep.subr.bf16.mxu0 0
    %665 = vmatpush1.bf16.msra.mxu0 0
    %666 = vmatprep.subr.bf16.mxu0 0
    %667 = vmatpush1.bf16.msra.mxu0 0
    %668 = vmatprep.subr.bf16.mxu0 0
    %669 = vmatpush1.bf16.msra.mxu0 0
    %670 = vmatprep.subr.bf16.mxu0 0
    %671 = vmatpush1.bf16.msra.mxu0 0
    %672 = vmatprep.mubr.bf16.mxu0 0
    %673 = vmatmul.mubr.bf16.gmra.mrb[0].mxu0 %v359
    %v674 = vpop.f32.mrb[0].mxu0
    %v675 = vadd.f32 %v530, %v674
    %v676 = vpop.f32.mrb[0].mxu0
    %v677 = vpop.f32.mrb[0].mxu0
    %v678 = vadd.f32 %v533, %v677
    %v679 = vpop.f32.mrb[0].mxu0
    %680 = vmatprep.mubr.bf16.mxu0 0
    %681 = vmatmul.mubr.bf16.gmra.mrb[0].mxu0 %v360
    %v682 = vpop.f32.mrb[0].mxu0
    %v683 = vadd.f32 %v538, %v682
    %v684 = vpop.f32.mrb[0].mxu0
    %v685 = vpop.f32.mrb[0].mxu0
    %v686 = vadd.f32 %v541, %v685
    %v687 = vpop.f32.mrb[0].mxu0
    %688 = vmatprep.mubr.bf16.mxu0 0
    %689 = vmatmul.mubr.bf16.gmra.mrb[0].mxu0 %v361
    %v690 = vpop.f32.mrb[0].mxu0
    %v691 = vadd.f32 %v546, %v690
    %v692 = vpop.f32.mrb[0].mxu0
    %v693 = vpop.f32.mrb[0].mxu0
    %v694 = vadd.f32 %v549, %v693
    %v695 = vpop.f32.mrb[0].mxu0
    %696 = vmatprep.mubr.bf16.mxu0 0
    %697 = vmatmul.mubr.bf16.gmra.mrb[0].mxu0 %v362
    %v698 = vpop.f32.mrb[0].mxu0
    %v699 = vadd.f32 %v554, %v698
    %v700 = vpop.f32.mrb[0].mxu0
    %v701 = vpop.f32.mrb[0].mxu0
    %v702 = vadd.f32 %v557, %v701
    %v703 = vpop.f32.mrb[0].mxu0
    %704 = vmatprep.mubr.bf16.mxu0 0
    %705 = vmatmul.mubr.bf16.gmra.mrb[0].mxu0 %v363
    %v706 = vpop.f32.mrb[0].mxu0
    %v707 = vadd.f32 %v562, %v706
    %v708 = vpop.f32.mrb[0].mxu0
    %v709 = vpop.f32.mrb[0].mxu0
    %v710 = vadd.f32 %v565, %v709
    %v711 = vpop.f32.mrb[0].mxu0
    %712 = vmatprep.mubr.bf16.mxu0 0
    %713 = vmatmul.mubr.bf16.gmra.mrb[0].mxu0 %v364
    %v714 = vpop.f32.mrb[0].mxu0
    %v715 = vadd.f32 %v570, %v714
    %v716 = vpop.f32.mrb[0].mxu0
    %v717 = vpop.f32.mrb[0].mxu0
    %v718 = vadd.f32 %v573, %v717
    %v719 = vpop.f32.mrb[0].mxu0
    %720 = vmatprep.mubr.bf16.mxu0 0
    %721 = vmatmul.mubr.bf16.gmra.mrb[0].mxu0 %v365
    %v722 = vpop.f32.mrb[0].mxu0
    %v723 = vadd.f32 %v578, %v722
    %v724 = vpop.f32.mrb[0].mxu0
    %v725 = vpop.f32.mrb[0].mxu0
    %v726 = vadd.f32 %v581, %v725
    %v727 = vpop.f32.mrb[0].mxu0
    %728 = vmatprep.mubr.bf16.mxu0 0
    %729 = vmatmul.mubr.bf16.gmra.mrb[0].mxu0 %v366
    %v730 = vpop.f32.mrb[0].mxu0
    %v731 = vadd.f32 %v586, %v730
    %v732 = vpop.f32.mrb[0].mxu0
    %v733 = vpop.f32.mrb[0].mxu0
    %v734 = vadd.f32 %v589, %v733
    %v735 = vpop.f32.mrb[0].mxu0
    %736 = vdwg.mxu0
    %v737 = vld [vmem:[%s5] sm:$0x1]
    %v739 = vlaneseq
    %v740 = vshrl.u32 %v739, 7
    %v741 = vsub.s32 0, %v740
    %v742 = vrot.slane %v737, %v741
    %v744 = vadd.f32 %v675, %v742
    %v745 = vadd.f32 %v678, %v742
    %v746 = vadd.f32 %v683, %v742
    %v747 = vadd.f32 %v686, %v742
    %v748 = vadd.f32 %v691, %v742
    %v749 = vadd.f32 %v694, %v742
    %v750 = vadd.f32 %v699, %v742
    %v751 = vadd.f32 %v702, %v742
    %v752 = vadd.f32 %v707, %v742
    %v753 = vadd.f32 %v710, %v742
    %v754 = vadd.f32 %v715, %v742
    %v755 = vadd.f32 %v718, %v742
    %v756 = vadd.f32 %v723, %v742
    %v757 = vadd.f32 %v726, %v742
    %v758 = vadd.f32 %v731, %v742
    %v759 = vadd.f32 %v734, %v742
    %v760 = vmax.f32 %v744, 0.0
    %v761 = vmax.f32 %v745, 0.0
    %v762 = vmax.f32 %v746, 0.0
    %v763 = vmax.f32 %v747, 0.0
    %v764 = vmax.f32 %v748, 0.0
    %v765 = vmax.f32 %v749, 0.0
    %v766 = vmax.f32 %v750, 0.0
    %v767 = vmax.f32 %v751, 0.0
    %v768 = vmax.f32 %v752, 0.0
    %v769 = vmax.f32 %v753, 0.0
    %v770 = vmax.f32 %v754, 0.0
    %v771 = vmax.f32 %v755, 0.0
    %v772 = vmax.f32 %v756, 0.0
    %v773 = vmax.f32 %v757, 0.0
    %v774 = vmax.f32 %v758, 0.0
    %v775 = vmax.f32 %v759, 0.0
    %v776 = vpack.c.bf16 %v761, %v760
    %v777 = vpack.c.bf16 %v763, %v762
    %v778 = vpack.c.bf16 %v765, %v764
    %v779 = vpack.c.bf16 %v767, %v766
    %v780 = vpack.c.bf16 %v769, %v768
    %v781 = vpack.c.bf16 %v771, %v770
    %v782 = vpack.c.bf16 %v773, %v772
    %v783 = vpack.c.bf16 %v775, %v774
    %v792 = vunpack.c.l.b16 %v776
    %v793 = vunpack.c.h.b16 %v776
    %v794 = vunpack.c.l.b16 %v777
    %v795 = vunpack.c.h.b16 %v777
    %v796 = vunpack.c.l.b16 %v778
    %v797 = vunpack.c.h.b16 %v778
    %v798 = vunpack.c.l.b16 %v779
    %v799 = vunpack.c.h.b16 %v779
    %v800 = vunpack.c.l.b16 %v780
    %v801 = vunpack.c.h.b16 %v780
    %v802 = vunpack.c.l.b16 %v781
    %v803 = vunpack.c.h.b16 %v781
    %v804 = vunpack.c.l.b16 %v782
    %v805 = vunpack.c.h.b16 %v782
    %v806 = vunpack.c.l.b16 %v783
    %v807 = vunpack.c.h.b16 %v783
    %v808 = vpack.c.b16 %v792, %v792
    %v809 = vpack.c.b16 %v793, %v793
    %v810 = vpack.c.b16 %v794, %v794
    %v811 = vpack.c.b16 %v795, %v795
    %v812 = vpack.c.b16 %v796, %v796
    %v813 = vpack.c.b16 %v797, %v797
    %v814 = vpack.c.b16 %v798, %v798
    %v815 = vpack.c.b16 %v799, %v799
    %v816 = vpack.c.b16 %v800, %v800
    %v817 = vpack.c.b16 %v801, %v801
    %v818 = vpack.c.b16 %v802, %v802
    %v819 = vpack.c.b16 %v803, %v803
    %v820 = vpack.c.b16 %v804, %v804
    %v821 = vpack.c.b16 %v805, %v805
    %v822 = vpack.c.b16 %v806, %v806
    %v823 = vpack.c.b16 %v807, %v807
    %840 = vst [vmem:[#allocation7] sm:$0xf] %v808
    %841 = vst [vmem:[#allocation7 + $0x4] sm:$0xf] %v809
    %842 = vst [vmem:[#allocation7 + $0x8] sm:$0xf] %v810
    %843 = vst [vmem:[#allocation7 + $0xc] sm:$0xf] %v811
    %844 = vst [vmem:[#allocation7 + $0x10] sm:$0xf] %v812
    %845 = vst [vmem:[#allocation7 + $0x14] sm:$0xf] %v813
    %846 = vst [vmem:[#allocation7 + $0x18] sm:$0xf] %v814
    %847 = vst [vmem:[#allocation7 + $0x1c] sm:$0xf] %v815
    %848 = vst [vmem:[#allocation7 + $0x20] sm:$0xf] %v816
    %849 = vst [vmem:[#allocation7 + $0x24] sm:$0xf] %v817
    %850 = vst [vmem:[#allocation7 + $0x28] sm:$0xf] %v818
    %851 = vst [vmem:[#allocation7 + $0x2c] sm:$0xf] %v819
    %852 = vst [vmem:[#allocation7 + $0x30] sm:$0xf] %v820
    %853 = vst [vmem:[#allocation7 + $0x34] sm:$0xf] %v821
    %854 = vst [vmem:[#allocation7 + $0x38] sm:$0xf] %v822
    %855 = vst [vmem:[#allocation7 + $0x3c] sm:$0xf] %v823
    // Predicated region
    $region34: #{tpu_custom_call.1} parent=1 // pred_check
      _
    $region35: #{tpu_custom_call.1} parent=1 // pred_check_branch
      %857 = sbr.rel (0) target = $region37
    $region36: #{tpu_custom_call.1} parent=1 // pred_region
      %s859 = ssub.s32 1024, 1024
      %860 = vsyncadd [#allocation4], %s859
      %s861 = sshll.u32 [#allocation7], 4
      %s862 = int_to_ptr.vmem [resolvable:$true] %s861
      %867 = dma.vmem_to_hbm [thread:$0]  %s862, 1024, %s6, [#allocation4], 64, 64, 4
    $region37: #{tpu_custom_call.1} parent=1 // pred_fallthru
      _
    // Predicated region
    $region38: #{tpu_custom_call.1} parent=1 // pred_check
      _
    $region39: #{tpu_custom_call.1} parent=1 // pred_check_branch
      %869 = sbr.rel (0) target = $region41
    $region40: #{tpu_custom_call.1} parent=1 // pred_region
      %870 = dma.done [#allocation4], 1024
    $region41: #{tpu_custom_call.1} parent=1 // pred_fallthru
      _
    %871 = vsyncpa [#allocation3], 1
    %872 = vsyncpa [#allocation6], 1
    %873 = vsyncpa [#allocation4], 1

</llo_original>
